<compile_context>
chip_gen: v6e
topology: v6e:2x2x1
jax: 0.10.0
libtpu: 0.0.40
codegen_flags: <defaults>
</compile_context>

<pallas_src>
import functools
import math

import jax
import jax.numpy as jnp
from jax.experimental import pallas as pl
from jax.experimental.pallas import tpu as pltpu


# ---------------------------------------------------------------------------
# Kernel 1: fused multi-head self-attention + residual (one batch element per
# grid step; grid axis is "parallel").
# ---------------------------------------------------------------------------
def _mha_kernel(x_ref, wq_ref, wk_ref, wv_ref, bq_ref, bk_ref, bv_ref,
                wout_ref, bout_ref, o_ref, *, n_heads):
    x = x_ref[0]                                     # (S, E)
    S, E = x.shape
    dh = E // n_heads
    scale = 1.0 / math.sqrt(dh)

    xf = x.astype(jnp.float32)
    q = jnp.dot(xf, wq_ref[...].astype(jnp.float32),
                preferred_element_type=jnp.float32) + bq_ref[...].astype(jnp.float32)
    k = jnp.dot(xf, wk_ref[...].astype(jnp.float32),
                preferred_element_type=jnp.float32) + bk_ref[...].astype(jnp.float32)
    v = jnp.dot(xf, wv_ref[...].astype(jnp.float32),
                preferred_element_type=jnp.float32) + bv_ref[...].astype(jnp.float32)

    out = jnp.zeros((S, E), jnp.float32)
    for h in range(n_heads):                         # static, small head count
        lo, hi = h * dh, (h + 1) * dh
        qh = q[:, lo:hi]
        kh = k[:, lo:hi]
        vh = v[:, lo:hi]
        # scores = qh @ kh^T  (contract last dims -> no explicit transpose)
        s = jax.lax.dot_general(qh, kh, (((1,), (1,)), ((), ())),
                                preferred_element_type=jnp.float32) * scale
        s = s - jnp.max(s, axis=-1, keepdims=True)
        p = jnp.exp(s)
        p = p / jnp.sum(p, axis=-1, keepdims=True)
        ctx_h = jnp.dot(p, vh, preferred_element_type=jnp.float32)   # (S, dh)
        # Accumulate the output projection head-by-head: sublane-aligned row
        # slice of wout, avoids a lane-axis concatenate of narrow heads.
        out = out + jnp.dot(ctx_h, wout_ref[lo:hi, :].astype(jnp.float32),
                            preferred_element_type=jnp.float32)
    out = out + bout_ref[...].astype(jnp.float32)
    o_ref[0] = (xf + out).astype(o_ref.dtype)        # residual fused in-kernel


# ---------------------------------------------------------------------------
# Kernel 2: fused LayerNorm + MLP (Linear -> GELU -> Linear) + residual over a
# row tile.
# ---------------------------------------------------------------------------
def _ln_ffn_kernel(x_ref, g_ref, b_ref, w1_ref, b1_ref, w2_ref, b2_ref, o_ref,
                   *, eps):
    x = x_ref[...].astype(jnp.float32)               # (R, E)
    mu = jnp.mean(x, axis=-1, keepdims=True)
    xc = x - mu
    var = jnp.mean(xc * xc, axis=-1, keepdims=True)
    xn = xc * jax.lax.rsqrt(var + eps)
    xn = xn * g_ref[...].astype(jnp.float32) + b_ref[...].astype(jnp.float32)
    h = jnp.dot(xn, w1_ref[...].astype(jnp.float32),
                preferred_element_type=jnp.float32) + b1_ref[...].astype(jnp.float32)
    h = jax.nn.gelu(h, approximate=True)             # tanh-approx GELU (EUP path)
    y = jnp.dot(h, w2_ref[...].astype(jnp.float32),
                preferred_element_type=jnp.float32) + b2_ref[...].astype(jnp.float32)
    o_ref[...] = (x + y).astype(o_ref.dtype)         # residual fused in-kernel


# ---------------------------------------------------------------------------
# Wrappers
# ---------------------------------------------------------------------------
def mha_residual(x, p, n_heads):
    """x: (B, S, E) -> self-attention(x) + x."""
    B, S, E = x.shape
    itemsize = jnp.dtype(x.dtype).itemsize
    flops = int(B * (8 * S * E * E + 4 * S * S * E))
    transcendentals = int(B * n_heads * S * S)
    bytes_accessed = int(itemsize * (2 * B * S * E + 4 * E * E + 4 * E))

    kernel = functools.partial(_mha_kernel, n_heads=n_heads)
    full = lambda b: (0, 0)
    return pl.pallas_call(
        kernel,
        out_shape=jax.ShapeDtypeStruct((B, S, E), x.dtype),
        grid_spec=pltpu.PrefetchScalarGridSpec(
            num_scalar_prefetch=0,
            grid=(B,),
            in_specs=[
                pl.BlockSpec((1, S, E), lambda b: (b, 0, 0)),
                pl.BlockSpec((E, E), full),   # wq
                pl.BlockSpec((E, E), full),   # wk
                pl.BlockSpec((E, E), full),   # wv
                pl.BlockSpec((1, E), full),   # bq
                pl.BlockSpec((1, E), full),   # bk
                pl.BlockSpec((1, E), full),   # bv
                pl.BlockSpec((E, E), full),   # wout
                pl.BlockSpec((1, E), full),   # bout
            ],
            out_specs=pl.BlockSpec((1, S, E), lambda b: (b, 0, 0)),
        ),
        compiler_params=pltpu.CompilerParams(dimension_semantics=("parallel",)),
        cost_estimate=pl.CostEstimate(flops=flops, transcendentals=transcendentals,
                                      bytes_accessed=bytes_accessed),
    )(x, p["wq"], p["wk"], p["wv"], p["bq"], p["bk"], p["bv"],
      p["wout"], p["bout"])


def _row_tile(rows, e, f, max_bytes=8 << 20):
    """Largest row tile that divides `rows`, is a multiple of 8 (or all rows),
    and keeps double-buffered activations well under scoped VMEM (all gens)."""
    budget = max(8, max_bytes // (2 * 4 * (e + f)))
    if rows <= budget:
        return rows
    t = (min(budget, rows) // 8) * 8
    while t >= 8:
        if rows % t == 0:
            return t
        t -= 8
    return rows


def ln_ffn_residual(x2, p):
    """x2: (R, E) -> MLP(LayerNorm(x2)) + x2."""
    R, E = x2.shape
    F = p["w1"].shape[1]
    tile = _row_tile(R, E, F)
    itemsize = jnp.dtype(x2.dtype).itemsize
    flops = int(4 * R * E * F)
    transcendentals = int(R * F)
    bytes_accessed = int(itemsize * (2 * R * E + 2 * E * F + F + 3 * E))

    kernel = functools.partial(_ln_ffn_kernel, eps=1e-5)
    full = lambda i: (0, 0)
    return pl.pallas_call(
        kernel,
        out_shape=jax.ShapeDtypeStruct((R, E), x2.dtype),
        grid_spec=pltpu.PrefetchScalarGridSpec(
            num_scalar_prefetch=0,
            grid=(R // tile,),
            in_specs=[
                pl.BlockSpec((tile, E), lambda i: (i, 0)),
                pl.BlockSpec((1, E), full),   # ln gamma
                pl.BlockSpec((1, E), full),   # ln beta
                pl.BlockSpec((E, F), full),   # w1
                pl.BlockSpec((1, F), full),   # b1
                pl.BlockSpec((F, E), full),   # w2
                pl.BlockSpec((1, E), full),   # b2
            ],
            out_specs=pl.BlockSpec((tile, E), lambda i: (i, 0)),
        ),
        compiler_params=pltpu.CompilerParams(dimension_semantics=("parallel",)),
        cost_estimate=pl.CostEstimate(flops=flops, transcendentals=transcendentals,
                                      bytes_accessed=bytes_accessed),
    )(x2, p["g"], p["b"], p["w1"], p["b1"], p["w2"], p["b2"])


def rowcol_transformer_forward(x, params, n_heads):
    """Pallas implementation of RowColTransformer.forward (inference)."""
    N, J, D = x.shape
    for lyr in params:
        x = mha_residual(x, lyr["attn1"], n_heads)                       # col attn + res
        x = ln_ffn_residual(x.reshape(N * J, D), lyr["ff1"]).reshape(N, J, D)
        xr = x.reshape(1, N, J * D)                                      # 'b n d -> 1 b (n d)'
        xr = mha_residual(xr, lyr["attn2"], n_heads)                     # row attn + res
        xr = ln_ffn_residual(xr.reshape(N, J * D), lyr["ff2"])
        x = xr.reshape(N, J, D)                                          # '1 b (n d) -> b n d'
    return x


# ---------------------------------------------------------------------------
# Pure-JAX reference (same math, no Pallas) for correctness checking.
# ---------------------------------------------------------------------------
def _ref_mha(x, p, n_heads):
    B, S, E = x.shape
    dh = E // n_heads
    scale = 1.0 / math.sqrt(dh)
    q = x @ p["wq"] + p["bq"][0]
    k = x @ p["wk"] + p["bk"][0]
    v = x @ p["wv"] + p["bv"][0]
    q = q.reshape(B, S, n_heads, dh).transpose(0, 2, 1, 3)
    k = k.reshape(B, S, n_heads, dh).transpose(0, 2, 1, 3)
    v = v.reshape(B, S, n_heads, dh).transpose(0, 2, 1, 3)
    s = jnp.einsum("bhqd,bhkd->bhqk", q, k) * scale
    a = jax.nn.softmax(s, axis=-1)
    ctx = jnp.einsum("bhqk,bhkd->bhqd", a, v).transpose(0, 2, 1, 3).reshape(B, S, E)
    return x + ctx @ p["wout"] + p["bout"][0]


def _ref_ln_ffn(x2, p, eps=1e-5):
    mu = x2.mean(-1, keepdims=True)
    var = ((x2 - mu) ** 2).mean(-1, keepdims=True)
    xn = (x2 - mu) * jax.lax.rsqrt(var + eps) * p["g"][0] + p["b"][0]
    h = jax.nn.gelu(xn @ p["w1"] + p["b1"][0], approximate=True)
    return x2 + h @ p["w2"] + p["b2"][0]


def rowcol_transformer_ref(x, params, n_heads):
    N, J, D = x.shape
    for lyr in params:
        x = _ref_mha(x, lyr["attn1"], n_heads)
        x = _ref_ln_ffn(x.reshape(N * J, D), lyr["ff1"]).reshape(N, J, D)
        xr = x.reshape(1, N, J * D)
        xr = _ref_mha(xr, lyr["attn2"], n_heads)
        xr = _ref_ln_ffn(xr.reshape(N, J * D), lyr["ff2"])
        x = xr.reshape(N, J, D)
    return x


# ---------------------------------------------------------------------------
# Deterministic parameter construction (q/k/v split in the wrapper so every
# pallas operand tile is lane-aligned — no in-kernel slicing of a packed
# in_proj matrix).
# ---------------------------------------------------------------------------
def _attn_params(key, E, dtype):
    ks = jax.random.split(key, 8)
    s = 1.0 / math.sqrt(E)
    return dict(
        wq=jax.random.normal(ks[0], (E, E), dtype) * s,
        wk=jax.random.normal(ks[1], (E, E), dtype) * s,
        wv=jax.random.normal(ks[2], (E, E), dtype) * s,
        bq=jax.random.normal(ks[3], (1, E), dtype) * 0.02,
        bk=jax.random.normal(ks[4], (1, E), dtype) * 0.02,
        bv=jax.random.normal(ks[5], (1, E), dtype) * 0.02,
        wout=jax.random.normal(ks[6], (E, E), dtype) * s,
        bout=jax.random.normal(ks[7], (1, E), dtype) * 0.02,
    )


def _ff_params(key, E, dtype):
    ks = jax.random.split(key, 6)
    F = 4 * E
    return dict(
        g=1.0 + 0.1 * jax.random.normal(ks[0], (1, E), dtype),
        b=0.1 * jax.random.normal(ks[1], (1, E), dtype),
        w1=jax.random.normal(ks[2], (E, F), dtype) * (1.0 / math.sqrt(E)),
        b1=jax.random.normal(ks[3], (1, F), dtype) * 0.02,
        w2=jax.random.normal(ks[4], (F, E), dtype) * (1.0 / math.sqrt(F)),
        b2=jax.random.normal(ks[5], (1, E), dtype) * 0.02,
    )


def init_params(key, n_features, d_model, n_layers, n_heads, dtype=jnp.float32):
    assert d_model % n_heads == 0
    assert (d_model * n_features) % n_heads == 0
    layers = []
    for _ in range(n_layers):
        key, k1, k2, k3, k4 = jax.random.split(key, 5)
        layers.append(dict(
            attn1=_attn_params(k1, d_model, dtype),
            ff1=_ff_params(k2, d_model, dtype),
            attn2=_attn_params(k3, d_model * n_features, dtype),
            ff2=_ff_params(k4, d_model * n_features, dtype),
        ))
    return layers


if __name__ == "__main__":
    key = jax.random.PRNGKey(0)
    # small shapes consistent with the module: batch=2, n_features=8, d_model=32
    N, J, D = 2, 8, 32
    n_heads, n_layers = 4, 2

    kx, kp = jax.random.split(key)
    x = jax.random.normal(kx, (N, J, D), dtype=jnp.float32)
    params = init_params(kp, n_features=J, d_model=D,
                         n_layers=n_layers, n_heads=n_heads)

    y = rowcol_transformer_forward(x, params, n_heads)
    jax.block_until_ready(y)

    ref = rowcol_transformer_ref(x, params, n_heads)
    assert y.shape == ref.shape == (N, J, D)
    max_err = float(jnp.max(jnp.abs(y - ref)))
    assert bool(jnp.allclose(y, ref, atol=1e-3, rtol=1e-3)), f"max err {max_err}"

    print("KERNEL_OK")
</pallas_src>

<mosaic_0001>
module attributes {stable_mosaic.version = 11 : i64} {
  func.func @_mha_kernel(%arg0: i32, %arg1: memref<1x8x32xf32, #tpu.memory_space<vmem>>, %arg2: memref<32x32xf32, #tpu.memory_space<vmem>>, %arg3: memref<32x32xf32, #tpu.memory_space<vmem>>, %arg4: memref<32x32xf32, #tpu.memory_space<vmem>>, %arg5: memref<1x32xf32, #tpu.memory_space<vmem>>, %arg6: memref<1x32xf32, #tpu.memory_space<vmem>>, %arg7: memref<1x32xf32, #tpu.memory_space<vmem>>, %arg8: memref<32x32xf32, #tpu.memory_space<vmem>>, %arg9: memref<1x32xf32, #tpu.memory_space<vmem>>, %arg10: memref<1x8x32xf32, #tpu.memory_space<vmem>>) attributes {dimension_semantics = [#tpu.dimension_semantics<parallel>], iteration_bounds = array<i64: 2>, scalar_prefetch = 0 : i64, scratch_operands = 0 : i64, tpu.core_type = #tpu.core_type<tc>, window_params = [{transform_indices = @transform_0, window_bounds = array<i64: 1, 8, 32>}, {pipeline_mode = #tpu.pipeline_mode<synchronous>, transform_indices = @transform_1, window_bounds = array<i64: 32, 32>}, {pipeline_mode = #tpu.pipeline_mode<synchronous>, transform_indices = @transform_2, window_bounds = array<i64: 32, 32>}, {pipeline_mode = #tpu.pipeline_mode<synchronous>, transform_indices = @transform_3, window_bounds = array<i64: 32, 32>}, {pipeline_mode = #tpu.pipeline_mode<synchronous>, transform_indices = @transform_4, window_bounds = array<i64: 1, 32>}, {pipeline_mode = #tpu.pipeline_mode<synchronous>, transform_indices = @transform_5, window_bounds = array<i64: 1, 32>}, {pipeline_mode = #tpu.pipeline_mode<synchronous>, transform_indices = @transform_6, window_bounds = array<i64: 1, 32>}, {pipeline_mode = #tpu.pipeline_mode<synchronous>, transform_indices = @transform_7, window_bounds = array<i64: 32, 32>}, {pipeline_mode = #tpu.pipeline_mode<synchronous>, transform_indices = @transform_8, window_bounds = array<i64: 1, 32>}, {transform_indices = @transform_9, window_bounds = array<i64: 1, 8, 32>}]} {
    %c0 = arith.constant 0 : index
    %c0_0 = arith.constant 0 : index
    %c0_1 = arith.constant 0 : index
    %0 = vector.load %arg1[%c0, %c0_0, %c0_1] : memref<1x8x32xf32, #tpu.memory_space<vmem>>, vector<1x8x32xf32>
    %1 = vector.shape_cast %0 : vector<1x8x32xf32> to vector<8x32xf32>
    %c0_2 = arith.constant 0 : index
    %c0_3 = arith.constant 0 : index
    %2 = vector.load %arg2[%c0_2, %c0_3] : memref<32x32xf32, #tpu.memory_space<vmem>>, vector<32x32xf32>
    %cst = arith.constant dense<0.000000e+00> : vector<8x32xf32>
    %3 = tpu.matmul %1, %2, %cst {dimension_numbers = #tpu.dot_dimension_numbers<[1], [0], [0], [1], [0, 0, 1, 1], [], []>} : vector<8x32xf32>, vector<32x32xf32>, vector<8x32xf32> -> vector<8x32xf32>
    %c0_4 = arith.constant 0 : index
    %c0_5 = arith.constant 0 : index
    %4 = vector.load %arg5[%c0_4, %c0_5] : memref<1x32xf32, #tpu.memory_space<vmem>>, vector<1x32xf32>
    %5 = vector.broadcast %4 : vector<1x32xf32> to vector<8x32xf32>
    %6 = arith.addf %3, %5 : vector<8x32xf32>
    %c0_6 = arith.constant 0 : index
    %c0_7 = arith.constant 0 : index
    %7 = vector.load %arg3[%c0_6, %c0_7] : memref<32x32xf32, #tpu.memory_space<vmem>>, vector<32x32xf32>
    %cst_8 = arith.constant dense<0.000000e+00> : vector<8x32xf32>
    %8 = tpu.matmul %1, %7, %cst_8 {dimension_numbers = #tpu.dot_dimension_numbers<[1], [0], [0], [1], [0, 0, 1, 1], [], []>} : vector<8x32xf32>, vector<32x32xf32>, vector<8x32xf32> -> vector<8x32xf32>
    %c0_9 = arith.constant 0 : index
    %c0_10 = arith.constant 0 : index
    %9 = vector.load %arg6[%c0_9, %c0_10] : memref<1x32xf32, #tpu.memory_space<vmem>>, vector<1x32xf32>
    %10 = vector.broadcast %9 : vector<1x32xf32> to vector<8x32xf32>
    %11 = arith.addf %8, %10 : vector<8x32xf32>
    %c0_11 = arith.constant 0 : index
    %c0_12 = arith.constant 0 : index
    %12 = vector.load %arg4[%c0_11, %c0_12] : memref<32x32xf32, #tpu.memory_space<vmem>>, vector<32x32xf32>
    %cst_13 = arith.constant dense<0.000000e+00> : vector<8x32xf32>
    %13 = tpu.matmul %1, %12, %cst_13 {dimension_numbers = #tpu.dot_dimension_numbers<[1], [0], [0], [1], [0, 0, 1, 1], [], []>} : vector<8x32xf32>, vector<32x32xf32>, vector<8x32xf32> -> vector<8x32xf32>
    %c0_14 = arith.constant 0 : index
    %c0_15 = arith.constant 0 : index
    %14 = vector.load %arg7[%c0_14, %c0_15] : memref<1x32xf32, #tpu.memory_space<vmem>>, vector<1x32xf32>
    %15 = vector.broadcast %14 : vector<1x32xf32> to vector<8x32xf32>
    %16 = arith.addf %13, %15 : vector<8x32xf32>
    %cst_16 = arith.constant 0.000000e+00 : f32
    %17 = vector.broadcast %cst_16 : f32 to vector<8x32xf32>
    %18 = vector.extract_strided_slice %6 {offsets = [0, 0], sizes = [8, 8], strides = [1, 1]} : vector<8x32xf32> to vector<8x8xf32>
    %19 = vector.extract_strided_slice %11 {offsets = [0, 0], sizes = [8, 8], strides = [1, 1]} : vector<8x32xf32> to vector<8x8xf32>
    %20 = vector.extract_strided_slice %16 {offsets = [0, 0], sizes = [8, 8], strides = [1, 1]} : vector<8x32xf32> to vector<8x8xf32>
    %cst_17 = arith.constant dense<0.000000e+00> : vector<8x8xf32>
    %21 = tpu.matmul %18, %19, %cst_17 {dimension_numbers = #tpu.dot_dimension_numbers<[1], [1], [0], [0], [0, 0, 1, 0], [], []>} : vector<8x8xf32>, vector<8x8xf32>, vector<8x8xf32> -> vector<8x8xf32>
    %cst_18 = arith.constant 0.353553385 : f32
    %22 = vector.broadcast %cst_18 : f32 to vector<8x8xf32>
    %23 = arith.mulf %21, %22 : vector<8x8xf32>
    %cst_19 = arith.constant dense<0xFF800000> : vector<8xf32>
    %24 = vector.multi_reduction <maximumf>, %23, %cst_19 [1] : vector<8x8xf32> to vector<8xf32>
    %25 = vector.shape_cast %24 : vector<8xf32> to vector<8x1xf32>
    %26 = vector.broadcast %25 : vector<8x1xf32> to vector<8x8xf32>
    %27 = arith.subf %23, %26 : vector<8x8xf32>
    %28 = math.exp %27 : vector<8x8xf32>
    %cst_20 = arith.constant dense<0.000000e+00> : vector<8xf32>
    %29 = vector.multi_reduction <add>, %28, %cst_20 [1] : vector<8x8xf32> to vector<8xf32>
    %30 = vector.shape_cast %29 : vector<8xf32> to vector<8x1xf32>
    %31 = vector.broadcast %30 : vector<8x1xf32> to vector<8x8xf32>
    %32 = arith.divf %28, %31 : vector<8x8xf32>
    %cst_21 = arith.constant dense<0.000000e+00> : vector<8x8xf32>
    %33 = tpu.matmul %32, %20, %cst_21 {dimension_numbers = #tpu.dot_dimension_numbers<[1], [0], [0], [1], [0, 0, 1, 1], [], []>} : vector<8x8xf32>, vector<8x8xf32>, vector<8x8xf32> -> vector<8x8xf32>
    %c0_22 = arith.constant 0 : index
    %c0_23 = arith.constant 0 : index
    %34 = vector.load %arg8[%c0_22, %c0_23] : memref<32x32xf32, #tpu.memory_space<vmem>>, vector<8x32xf32>
    %cst_24 = arith.constant dense<0.000000e+00> : vector<8x32xf32>
    %35 = tpu.matmul %33, %34, %cst_24 {dimension_numbers = #tpu.dot_dimension_numbers<[1], [0], [0], [1], [0, 0, 1, 1], [], []>} : vector<8x8xf32>, vector<8x32xf32>, vector<8x32xf32> -> vector<8x32xf32>
    %36 = arith.addf %17, %35 : vector<8x32xf32>
    %37 = vector.extract_strided_slice %6 {offsets = [0, 8], sizes = [8, 8], strides = [1, 1]} : vector<8x32xf32> to vector<8x8xf32>
    %38 = vector.extract_strided_slice %11 {offsets = [0, 8], sizes = [8, 8], strides = [1, 1]} : vector<8x32xf32> to vector<8x8xf32>
    %39 = vector.extract_strided_slice %16 {offsets = [0, 8], sizes = [8, 8], strides = [1, 1]} : vector<8x32xf32> to vector<8x8xf32>
    %cst_25 = arith.constant dense<0.000000e+00> : vector<8x8xf32>
    %40 = tpu.matmul %37, %38, %cst_25 {dimension_numbers = #tpu.dot_dimension_numbers<[1], [1], [0], [0], [0, 0, 1, 0], [], []>} : vector<8x8xf32>, vector<8x8xf32>, vector<8x8xf32> -> vector<8x8xf32>
    %cst_26 = arith.constant 0.353553385 : f32
    %41 = vector.broadcast %cst_26 : f32 to vector<8x8xf32>
    %42 = arith.mulf %40, %41 : vector<8x8xf32>
    %cst_27 = arith.constant dense<0xFF800000> : vector<8xf32>
    %43 = vector.multi_reduction <maximumf>, %42, %cst_27 [1] : vector<8x8xf32> to vector<8xf32>
    %44 = vector.shape_cast %43 : vector<8xf32> to vector<8x1xf32>
    %45 = vector.broadcast %44 : vector<8x1xf32> to vector<8x8xf32>
    %46 = arith.subf %42, %45 : vector<8x8xf32>
    %47 = math.exp %46 : vector<8x8xf32>
    %cst_28 = arith.constant dense<0.000000e+00> : vector<8xf32>
    %48 = vector.multi_reduction <add>, %47, %cst_28 [1] : vector<8x8xf32> to vector<8xf32>
    %49 = vector.shape_cast %48 : vector<8xf32> to vector<8x1xf32>
    %50 = vector.broadcast %49 : vector<8x1xf32> to vector<8x8xf32>
    %51 = arith.divf %47, %50 : vector<8x8xf32>
    %cst_29 = arith.constant dense<0.000000e+00> : vector<8x8xf32>
    %52 = tpu.matmul %51, %39, %cst_29 {dimension_numbers = #tpu.dot_dimension_numbers<[1], [0], [0], [1], [0, 0, 1, 1], [], []>} : vector<8x8xf32>, vector<8x8xf32>, vector<8x8xf32> -> vector<8x8xf32>
    %c8 = arith.constant 8 : index
    %c0_30 = arith.constant 0 : index
    %53 = vector.load %arg8[%c8, %c0_30] : memref<32x32xf32, #tpu.memory_space<vmem>>, vector<8x32xf32>
    %cst_31 = arith.constant dense<0.000000e+00> : vector<8x32xf32>
    %54 = tpu.matmul %52, %53, %cst_31 {dimension_numbers = #tpu.dot_dimension_numbers<[1], [0], [0], [1], [0, 0, 1, 1], [], []>} : vector<8x8xf32>, vector<8x32xf32>, vector<8x32xf32> -> vector<8x32xf32>
    %55 = arith.addf %36, %54 : vector<8x32xf32>
    %56 = vector.extract_strided_slice %6 {offsets = [0, 16], sizes = [8, 8], strides = [1, 1]} : vector<8x32xf32> to vector<8x8xf32>
    %57 = vector.extract_strided_slice %11 {offsets = [0, 16], sizes = [8, 8], strides = [1, 1]} : vector<8x32xf32> to vector<8x8xf32>
    %58 = vector.extract_strided_slice %16 {offsets = [0, 16], sizes = [8, 8], strides = [1, 1]} : vector<8x32xf32> to vector<8x8xf32>
    %cst_32 = arith.constant dense<0.000000e+00> : vector<8x8xf32>
    %59 = tpu.matmul %56, %57, %cst_32 {dimension_numbers = #tpu.dot_dimension_numbers<[1], [1], [0], [0], [0, 0, 1, 0], [], []>} : vector<8x8xf32>, vector<8x8xf32>, vector<8x8xf32> -> vector<8x8xf32>
    %cst_33 = arith.constant 0.353553385 : f32
    %60 = vector.broadcast %cst_33 : f32 to vector<8x8xf32>
    %61 = arith.mulf %59, %60 : vector<8x8xf32>
    %cst_34 = arith.constant dense<0xFF800000> : vector<8xf32>
    %62 = vector.multi_reduction <maximumf>, %61, %cst_34 [1] : vector<8x8xf32> to vector<8xf32>
    %63 = vector.shape_cast %62 : vector<8xf32> to vector<8x1xf32>
    %64 = vector.broadcast %63 : vector<8x1xf32> to vector<8x8xf32>
    %65 = arith.subf %61, %64 : vector<8x8xf32>
    %66 = math.exp %65 : vector<8x8xf32>
    %cst_35 = arith.constant dense<0.000000e+00> : vector<8xf32>
    %67 = vector.multi_reduction <add>, %66, %cst_35 [1] : vector<8x8xf32> to vector<8xf32>
    %68 = vector.shape_cast %67 : vector<8xf32> to vector<8x1xf32>
    %69 = vector.broadcast %68 : vector<8x1xf32> to vector<8x8xf32>
    %70 = arith.divf %66, %69 : vector<8x8xf32>
    %cst_36 = arith.constant dense<0.000000e+00> : vector<8x8xf32>
    %71 = tpu.matmul %70, %58, %cst_36 {dimension_numbers = #tpu.dot_dimension_numbers<[1], [0], [0], [1], [0, 0, 1, 1], [], []>} : vector<8x8xf32>, vector<8x8xf32>, vector<8x8xf32> -> vector<8x8xf32>
    %c16 = arith.constant 16 : index
    %c0_37 = arith.constant 0 : index
    %72 = vector.load %arg8[%c16, %c0_37] : memref<32x32xf32, #tpu.memory_space<vmem>>, vector<8x32xf32>
    %cst_38 = arith.constant dense<0.000000e+00> : vector<8x32xf32>
    %73 = tpu.matmul %71, %72, %cst_38 {dimension_numbers = #tpu.dot_dimension_numbers<[1], [0], [0], [1], [0, 0, 1, 1], [], []>} : vector<8x8xf32>, vector<8x32xf32>, vector<8x32xf32> -> vector<8x32xf32>
    %74 = arith.addf %55, %73 : vector<8x32xf32>
    %75 = vector.extract_strided_slice %6 {offsets = [0, 24], sizes = [8, 8], strides = [1, 1]} : vector<8x32xf32> to vector<8x8xf32>
    %76 = vector.extract_strided_slice %11 {offsets = [0, 24], sizes = [8, 8], strides = [1, 1]} : vector<8x32xf32> to vector<8x8xf32>
    %77 = vector.extract_strided_slice %16 {offsets = [0, 24], sizes = [8, 8], strides = [1, 1]} : vector<8x32xf32> to vector<8x8xf32>
    %cst_39 = arith.constant dense<0.000000e+00> : vector<8x8xf32>
    %78 = tpu.matmul %75, %76, %cst_39 {dimension_numbers = #tpu.dot_dimension_numbers<[1], [1], [0], [0], [0, 0, 1, 0], [], []>} : vector<8x8xf32>, vector<8x8xf32>, vector<8x8xf32> -> vector<8x8xf32>
    %cst_40 = arith.constant 0.353553385 : f32
    %79 = vector.broadcast %cst_40 : f32 to vector<8x8xf32>
    %80 = arith.mulf %78, %79 : vector<8x8xf32>
    %cst_41 = arith.constant dense<0xFF800000> : vector<8xf32>
    %81 = vector.multi_reduction <maximumf>, %80, %cst_41 [1] : vector<8x8xf32> to vector<8xf32>
    %82 = vector.shape_cast %81 : vector<8xf32> to vector<8x1xf32>
    %83 = vector.broadcast %82 : vector<8x1xf32> to vector<8x8xf32>
    %84 = arith.subf %80, %83 : vector<8x8xf32>
    %85 = math.exp %84 : vector<8x8xf32>
    %cst_42 = arith.constant dense<0.000000e+00> : vector<8xf32>
    %86 = vector.multi_reduction <add>, %85, %cst_42 [1] : vector<8x8xf32> to vector<8xf32>
    %87 = vector.shape_cast %86 : vector<8xf32> to vector<8x1xf32>
    %88 = vector.broadcast %87 : vector<8x1xf32> to vector<8x8xf32>
    %89 = arith.divf %85, %88 : vector<8x8xf32>
    %cst_43 = arith.constant dense<0.000000e+00> : vector<8x8xf32>
    %90 = tpu.matmul %89, %77, %cst_43 {dimension_numbers = #tpu.dot_dimension_numbers<[1], [0], [0], [1], [0, 0, 1, 1], [], []>} : vector<8x8xf32>, vector<8x8xf32>, vector<8x8xf32> -> vector<8x8xf32>
    %c24 = arith.constant 24 : index
    %c0_44 = arith.constant 0 : index
    %91 = vector.load %arg8[%c24, %c0_44] : memref<32x32xf32, #tpu.memory_space<vmem>>, vector<8x32xf32>
    %cst_45 = arith.constant dense<0.000000e+00> : vector<8x32xf32>
    %92 = tpu.matmul %90, %91, %cst_45 {dimension_numbers = #tpu.dot_dimension_numbers<[1], [0], [0], [1], [0, 0, 1, 1], [], []>} : vector<8x8xf32>, vector<8x32xf32>, vector<8x32xf32> -> vector<8x32xf32>
    %93 = arith.addf %74, %92 : vector<8x32xf32>
    %c0_46 = arith.constant 0 : index
    %c0_47 = arith.constant 0 : index
    %94 = vector.load %arg9[%c0_46, %c0_47] : memref<1x32xf32, #tpu.memory_space<vmem>>, vector<1x32xf32>
    %95 = vector.broadcast %94 : vector<1x32xf32> to vector<8x32xf32>
    %96 = arith.addf %93, %95 : vector<8x32xf32>
    %97 = arith.addf %1, %96 : vector<8x32xf32>
    %c0_48 = arith.constant 0 : index
    %c0_49 = arith.constant 0 : index
    %c0_50 = arith.constant 0 : index
    %98 = vector.load %arg10[%c0_48, %c0_49, %c0_50] : memref<1x8x32xf32, #tpu.memory_space<vmem>>, vector<1x8x32xf32>
    %99 = vector.shape_cast %98 : vector<1x8x32xf32> to vector<8x32xf32>
    %100 = vector.shape_cast %97 : vector<8x32xf32> to vector<1x8x32xf32>
    tpu.vector_store %arg10[%c0_48, %c0_49, %c0_50], %100 {strides = array<i32>} : memref<1x8x32xf32, #tpu.memory_space<vmem>>, vector<1x8x32xf32>,
    return
  }
  func.func @transform_0(%arg0: i32) -> (i32, i32, i32) {
    %c0_i32 = arith.constant 0 : i32
    %c0_i32_0 = arith.constant 0 : i32
    %c0_i32_1 = arith.constant 0 : i32
    return %arg0, %c0_i32, %c0_i32_0 : i32, i32, i32
  }
  func.func @transform_1(%arg0: i32) -> (i32, i32) {
    %c0_i32 = arith.constant 0 : i32
    %c0_i32_0 = arith.constant 0 : i32
    %c0_i32_1 = arith.constant 0 : i32
    return %c0_i32, %c0_i32_0 : i32, i32
  }
  func.func @transform_2(%arg0: i32) -> (i32, i32) {
    %c0_i32 = arith.constant 0 : i32
    %c0_i32_0 = arith.constant 0 : i32
    %c0_i32_1 = arith.constant 0 : i32
    return %c0_i32, %c0_i32_0 : i32, i32
  }
  func.func @transform_3(%arg0: i32) -> (i32, i32) {
    %c0_i32 = arith.constant 0 : i32
    %c0_i32_0 = arith.constant 0 : i32
    %c0_i32_1 = arith.constant 0 : i32
    return %c0_i32, %c0_i32_0 : i32, i32
  }
  func.func @transform_4(%arg0: i32) -> (i32, i32) {
    %c0_i32 = arith.constant 0 : i32
    %c0_i32_0 = arith.constant 0 : i32
    %c0_i32_1 = arith.constant 0 : i32
    return %c0_i32, %c0_i32_0 : i32, i32
  }
  func.func @transform_5(%arg0: i32) -> (i32, i32) {
    %c0_i32 = arith.constant 0 : i32
    %c0_i32_0 = arith.constant 0 : i32
    %c0_i32_1 = arith.constant 0 : i32
    return %c0_i32, %c0_i32_0 : i32, i32
  }
  func.func @transform_6(%arg0: i32) -> (i32, i32) {
    %c0_i32 = arith.constant 0 : i32
    %c0_i32_0 = arith.constant 0 : i32
    %c0_i32_1 = arith.constant 0 : i32
    return %c0_i32, %c0_i32_0 : i32, i32
  }
  func.func @transform_7(%arg0: i32) -> (i32, i32) {
    %c0_i32 = arith.constant 0 : i32
    %c0_i32_0 = arith.constant 0 : i32
    %c0_i32_1 = arith.constant 0 : i32
    return %c0_i32, %c0_i32_0 : i32, i32
  }
  func.func @transform_8(%arg0: i32) -> (i32, i32) {
    %c0_i32 = arith.constant 0 : i32
    %c0_i32_0 = arith.constant 0 : i32
    %c0_i32_1 = arith.constant 0 : i32
    return %c0_i32, %c0_i32_0 : i32, i32
  }
  func.func @transform_9(%arg0: i32) -> (i32, i32, i32) {
    %c0_i32 = arith.constant 0 : i32
    %c0_i32_0 = arith.constant 0 : i32
    %c0_i32_1 = arith.constant 0 : i32
    return %arg0, %c0_i32, %c0_i32_0 : i32, i32, i32
  }
}

</mosaic_0001>

<llo_original>
// kernel: tpu_custom_call.1
$region0: #{tpu_custom_call.1}
  #allocation0 [shape = 'u32[]', space=smem, size = 0x4, offset = 0x4, fixed_abs, tag = 'smem constant byte address 0x4 - core index']
  #allocation1 [shape = 'u32[144,128]{1,0:T(1,128)}', space=vmem, size = 0x12000, scoped, tag = 'internal scratch']
  %s0 = inlined_call_operand.hbm [shape: f32[2,8,32], index: 0, kind: input, shape index: {}]
  %s1 = inlined_call_operand.hbm [shape: f32[32,32], index: 1, kind: input, shape index: {}]
  %s2 = inlined_call_operand.hbm [shape: f32[32,32], index: 2, kind: input, shape index: {}]
  %s3 = inlined_call_operand.hbm [shape: f32[32,32], index: 3, kind: input, shape index: {}]
  %s4 = inlined_call_operand.vmem [shape: f32[1,32], index: 4, kind: input, shape index: {}]
  %s5 = inlined_call_operand.vmem [shape: f32[1,32], index: 5, kind: input, shape index: {}]
  %s6 = inlined_call_operand.vmem [shape: f32[1,32], index: 6, kind: input, shape index: {}]
  %s7 = inlined_call_operand.hbm [shape: f32[32,32], index: 7, kind: input, shape index: {}]
  %s8 = inlined_call_operand.vmem [shape: f32[1,32], index: 8, kind: input, shape index: {}]
  %s9 = inlined_call_operand.hbm [shape: f32[2,8,32], index: 9, kind: output, shape index: {}]
  %s10 = sld [smem:[#allocation0]]
  $region89: #{tpu_custom_call.1} parent=0
    _
  %s12 = ssub.s32 1, %s10
  %s13 = scalar_select 0, %s12, %s10
  $region1: #{tpu_custom_call.1} parent=0
    #allocation2 [shape = 'u8[8192]{0}', space=vmem, size = 0x2000, scoped, tag = 'input window, operand 0']
    #allocation3 [shape = 's32[2]{0}', space=sflag, size = 0x8, scoped, tag = 'scoped memory for tpu_custom_call.1']
    #allocation4 [shape = 's32[2]{0}', space=sflag, size = 0x8, scoped, tag = 'scoped memory for tpu_custom_call.1']
    #allocation5 [shape = 'u8[16384]{0}', space=vmem, size = 0x4000, scoped, tag = 'input window, operand 1, single buffered']
    #allocation6 [shape = 's32[1]{0}', space=sflag, size = 0x4, scoped, tag = 'scoped memory for tpu_custom_call.1']
    #allocation7 [shape = 'u8[16384]{0}', space=vmem, size = 0x4000, scoped, tag = 'input window, operand 2, single buffered']
    #allocation8 [shape = 'u8[16384]{0}', space=vmem, size = 0x4000, scoped, tag = 'input window, operand 3, single buffered']
    #allocation9 [shape = 's32[1]{0}', space=sflag, size = 0x4, scoped, tag = 'scoped memory for tpu_custom_call.1']
    #allocation10 [shape = 'u8[16384]{0}', space=vmem, size = 0x4000, scoped, tag = 'input window, operand 7, single buffered']
    #allocation11 [shape = 'u8[8192]{0}', space=vmem, size = 0x2000, scoped, tag = 'output window, operand 0']
    %14 = vsyncpa [#allocation3], 0
    %s15 = scalar_lea.sflag [#allocation3], 1
    %16 = vsyncpa %s15, 0
    %17 = vsyncpa [#allocation6], 0
    %18 = vsyncpa [#allocation9], 0
    %19 = vsyncpa [#allocation4], 0
    %s20 = scalar_lea.sflag [#allocation4], 1
    %21 = vsyncpa %s20, 0
    loop: start=0, step=1, limit=4
    $region2: #{tpu_custom_call.1} parent=1 // loop_pre_header
      _
    $region3: #{tpu_custom_call.1} parent=1 // loop_header
      %s23 = sphi 0, %s27
      %p24 = scmp.ge.s32.totalorder %s23, 4
      %s33 = sphi 0, %s35
      %s36 = sphi 0, %s33
      %s37 = sphi 0, %s36
      %s53 = sphi 0, %s37
      %s57 = sphi 0, %s57
      %s59 = sphi 0, %s57
      %s60 = sphi 0, %s59
      %s74 = sphi 0, %s60
      %s78 = sphi 0, %s78
      %s80 = sphi 0, %s78
      %s81 = sphi 0, %s80
      %s95 = sphi 0, %s81
      %s99 = sphi 0, %s99
      %s101 = sphi 0, %s99
      %s102 = sphi 0, %s101
      %s116 = sphi 0, %s102
      %s120 = sphi 0, %s120
      %s122 = sphi 0, %s120
      %s123 = sphi 0, %s122
      %s137 = sphi 0, %s123
      %s141 = sphi 0, %s141
      %s143 = sphi 0, %s141
      %s144 = sphi 0, %s143
      %s158 = sphi 0, %s144
      %s162 = sphi 0, %s162
      %s164 = sphi 0, %s162
      %s165 = sphi 0, %s164
      %s179 = sphi 0, %s165
      %s183 = sphi 0, %s183
      %s185 = sphi 0, %s183
      %s186 = sphi 0, %s185
      %s200 = sphi 0, %s186
      %s204 = sphi 0, %s204
      %s206 = sphi 0, %s204
      %s207 = sphi 0, %s206
      %s221 = sphi 0, %s207
      %s227 = sphi 0, %s229
      %s230 = sphi 0, %s227
      %s231 = sphi 0, %s230
      %s247 = sphi 0, %s231
    $region4: #{tpu_custom_call.1} parent=1 // loop_header_branch
      %26 = sbr.rel (%p24) target = $region8
    $region5: #{tpu_custom_call.1} parent=1 // loop_body
      %s28 = ssub.s32 %s23, 1
      %s29 = ssub.s32 %s23, 2
      %s30 = sadd.s32 %s23, 1
      %s31 = ssub.s32 %s23, %s30
      %p32 = scmp.eq.s32.totalorder %s31, 0
      %s34 = sadd.s32 %s33, 1
      %s35 = scalar_select %p32, %s33, %s34
      %p38 = pneg %p32
      %p39 = scmp.eq.s32.totalorder %s23, 1
      %p40 = por %p38, %p39
      %p41 = scmp.ne.s32.totalorder %s33, %s36
      %p42 = scmp.eq.s32.totalorder %s23, 0
      %p43 = por %p41, %p42
      %p44 = scmp.ne.s32.totalorder %s33, %s36
      %p45 = scmp.eq.s32.totalorder %s28, 1
      %p46 = por %p44, %p45
      %p47 = scmp.ne.s32.totalorder %s36, %s37
      %p48 = scmp.eq.s32.totalorder %s28, 0
      %p49 = por %p47, %p48
      %p50 = scmp.ne.s32.totalorder %s36, %s37
      %p51 = scmp.eq.s32.totalorder %s29, 1
      %p52 = por %p50, %p51
      %p54 = scmp.ne.s32.totalorder %s37, %s53
      %p55 = scmp.eq.s32.totalorder %s29, 0
      %p56 = por %p54, %p55
      %s58 = sadd.s32 %s57, 1
      %p61 = scmp.eq.s32.totalorder %s23, 1
      %p62 = scmp.ne.s32.totalorder %s57, %s59
      %p63 = scmp.eq.s32.totalorder %s23, 0
      %p64 = por %p62, %p63
      %p65 = scmp.ne.s32.totalorder %s57, %s59
      %p66 = scmp.eq.s32.totalorder %s28, 1
      %p67 = por %p65, %p66
      %p68 = scmp.ne.s32.totalorder %s59, %s60
      %p69 = scmp.eq.s32.totalorder %s28, 0
      %p70 = por %p68, %p69
      %p71 = scmp.ne.s32.totalorder %s59, %s60
      %p72 = scmp.eq.s32.totalorder %s29, 1
      %p73 = por %p71, %p72
      %p75 = scmp.ne.s32.totalorder %s60, %s74
      %p76 = scmp.eq.s32.totalorder %s29, 0
      %p77 = por %p75, %p76
      %s79 = sadd.s32 %s78, 1
      %p82 = scmp.eq.s32.totalorder %s23, 1
      %p83 = scmp.ne.s32.totalorder %s78, %s80
      %p84 = scmp.eq.s32.totalorder %s23, 0
      %p85 = por %p83, %p84
      %p86 = scmp.ne.s32.totalorder %s78, %s80
      %p87 = scmp.eq.s32.totalorder %s28, 1
      %p88 = por %p86, %p87
      %p89 = scmp.ne.s32.totalorder %s80, %s81
      %p90 = scmp.eq.s32.totalorder %s28, 0
      %p91 = por %p89, %p90
      %p92 = scmp.ne.s32.totalorder %s80, %s81
      %p93 = scmp.eq.s32.totalorder %s29, 1
      %p94 = por %p92, %p93
      %p96 = scmp.ne.s32.totalorder %s81, %s95
      %p97 = scmp.eq.s32.totalorder %s29, 0
      %p98 = por %p96, %p97
      %s100 = sadd.s32 %s99, 1
      %p103 = scmp.eq.s32.totalorder %s23, 1
      %p104 = scmp.ne.s32.totalorder %s99, %s101
      %p105 = scmp.eq.s32.totalorder %s23, 0
      %p106 = por %p104, %p105
      %p107 = scmp.ne.s32.totalorder %s99, %s101
      %p108 = scmp.eq.s32.totalorder %s28, 1
      %p109 = por %p107, %p108
      %p110 = scmp.ne.s32.totalorder %s101, %s102
      %p111 = scmp.eq.s32.totalorder %s28, 0
      %p112 = por %p110, %p111
      %p113 = scmp.ne.s32.totalorder %s101, %s102
      %p114 = scmp.eq.s32.totalorder %s29, 1
      %p115 = por %p113, %p114
      %p117 = scmp.ne.s32.totalorder %s102, %s116
      %p118 = scmp.eq.s32.totalorder %s29, 0
      %p119 = por %p117, %p118
      %s121 = sadd.s32 %s120, 1
      %p124 = scmp.eq.s32.totalorder %s23, 1
      %p125 = scmp.ne.s32.totalorder %s120, %s122
      %p126 = scmp.eq.s32.totalorder %s23, 0
      %p127 = por %p125, %p126
      %p128 = scmp.ne.s32.totalorder %s120, %s122
      %p129 = scmp.eq.s32.totalorder %s28, 1
      %p130 = por %p128, %p129
      %p131 = scmp.ne.s32.totalorder %s122, %s123
      %p132 = scmp.eq.s32.totalorder %s28, 0
      %p133 = por %p131, %p132
      %p134 = scmp.ne.s32.totalorder %s122, %s123
      %p135 = scmp.eq.s32.totalorder %s29, 1
      %p136 = por %p134, %p135
      %p138 = scmp.ne.s32.totalorder %s123, %s137
      %p139 = scmp.eq.s32.totalorder %s29, 0
      %p140 = por %p138, %p139
      %s142 = sadd.s32 %s141, 1
      %p145 = scmp.eq.s32.totalorder %s23, 1
      %p146 = scmp.ne.s32.totalorder %s141, %s143
      %p147 = scmp.eq.s32.totalorder %s23, 0
      %p148 = por %p146, %p147
      %p149 = scmp.ne.s32.totalorder %s141, %s143
      %p150 = scmp.eq.s32.totalorder %s28, 1
      %p151 = por %p149, %p150
      %p152 = scmp.ne.s32.totalorder %s143, %s144
      %p153 = scmp.eq.s32.totalorder %s28, 0
      %p154 = por %p152, %p153
      %p155 = scmp.ne.s32.totalorder %s143, %s144
      %p156 = scmp.eq.s32.totalorder %s29, 1
      %p157 = por %p155, %p156
      %p159 = scmp.ne.s32.totalorder %s144, %s158
      %p160 = scmp.eq.s32.totalorder %s29, 0
      %p161 = por %p159, %p160
      %s163 = sadd.s32 %s162, 1
      %p166 = scmp.eq.s32.totalorder %s23, 1
      %p167 = scmp.ne.s32.totalorder %s162, %s164
      %p168 = scmp.eq.s32.totalorder %s23, 0
      %p169 = por %p167, %p168
      %p170 = scmp.ne.s32.totalorder %s162, %s164
      %p171 = scmp.eq.s32.totalorder %s28, 1
      %p172 = por %p170, %p171
      %p173 = scmp.ne.s32.totalorder %s164, %s165
      %p174 = scmp.eq.s32.totalorder %s28, 0
      %p175 = por %p173, %p174
      %p176 = scmp.ne.s32.totalorder %s164, %s165
      %p177 = scmp.eq.s32.totalorder %s29, 1
      %p178 = por %p176, %p177
      %p180 = scmp.ne.s32.totalorder %s165, %s179
      %p181 = scmp.eq.s32.totalorder %s29, 0
      %p182 = por %p180, %p181
      %s184 = sadd.s32 %s183, 1
      %p187 = scmp.eq.s32.totalorder %s23, 1
      %p188 = scmp.ne.s32.totalorder %s183, %s185
      %p189 = scmp.eq.s32.totalorder %s23, 0
      %p190 = por %p188, %p189
      %p191 = scmp.ne.s32.totalorder %s183, %s185
      %p192 = scmp.eq.s32.totalorder %s28, 1
      %p193 = por %p191, %p192
      %p194 = scmp.ne.s32.totalorder %s185, %s186
      %p195 = scmp.eq.s32.totalorder %s28, 0
      %p196 = por %p194, %p195
      %p197 = scmp.ne.s32.totalorder %s185, %s186
      %p198 = scmp.eq.s32.totalorder %s29, 1
      %p199 = por %p197, %p198
      %p201 = scmp.ne.s32.totalorder %s186, %s200
      %p202 = scmp.eq.s32.totalorder %s29, 0
      %p203 = por %p201, %p202
      %s205 = sadd.s32 %s204, 1
      %p208 = scmp.eq.s32.totalorder %s23, 1
      %p209 = scmp.ne.s32.totalorder %s204, %s206
      %p210 = scmp.eq.s32.totalorder %s23, 0
      %p211 = por %p209, %p210
      %p212 = scmp.ne.s32.totalorder %s204, %s206
      %p213 = scmp.eq.s32.totalorder %s28, 1
      %p214 = por %p212, %p213
      %p215 = scmp.ne.s32.totalorder %s206, %s207
      %p216 = scmp.eq.s32.totalorder %s28, 0
      %p217 = por %p215, %p216
      %p218 = scmp.ne.s32.totalorder %s206, %s207
      %p219 = scmp.eq.s32.totalorder %s29, 1
      %p220 = por %p218, %p219
      %p222 = scmp.ne.s32.totalorder %s207, %s221
      %p223 = scmp.eq.s32.totalorder %s29, 0
      %p224 = por %p222, %p223
      %s225 = ssub.s32 %s23, %s30
      %p226 = scmp.eq.s32.totalorder %s225, 0
      %s228 = sadd.s32 %s227, 1
      %s229 = scalar_select %p226, %s227, %s228
      %p232 = pneg %p226
      %p233 = scmp.eq.s32.totalorder %s23, 1
      %p234 = por %p232, %p233
      %p235 = scmp.ne.s32.totalorder %s227, %s230
      %p236 = scmp.eq.s32.totalorder %s23, 0
      %p237 = por %p235, %p236
      %p238 = scmp.ne.s32.totalorder %s227, %s230
      %p239 = scmp.eq.s32.totalorder %s28, 1
      %p240 = por %p238, %p239
      %p241 = scmp.ne.s32.totalorder %s230, %s231
      %p242 = scmp.eq.s32.totalorder %s28, 0
      %p243 = por %p241, %p242
      %p244 = scmp.ne.s32.totalorder %s230, %s231
      %p245 = scmp.eq.s32.totalorder %s29, 1
      %p246 = por %p244, %p245
      %p248 = scmp.ne.s32.totalorder %s231, %s247
      %p249 = scmp.eq.s32.totalorder %s29, 0
      %p250 = por %p248, %p249
      %p251 = scmp.le.s32.totalorder 1, %s23
      %p252 = scmp.lt.s32.totalorder %s23, 3
      %p253 = pnand %p251, %p252
      %p254 = pneg %p253
      // Predicated region
      $region9: #{tpu_custom_call.1} parent=5 // pred_check
        _
      $region10: #{tpu_custom_call.1} parent=5 // pred_check_branch
        %256 = sbr.rel (%p253) target = $region12
      $region11: #{tpu_custom_call.1} parent=5 // pred_region
        %s257 = ssub.s32 %s23, 1
        // Predicated region
        $region13: #{tpu_custom_call.1} parent=11 // pred_check
          %p258 = pneg %p70
        $region14: #{tpu_custom_call.1} parent=11 // pred_check_branch
          %260 = sbr.rel (%p258) target = $region16
        $region15: #{tpu_custom_call.1} parent=11 // pred_region
          %s262 = ssub.s32 512, 512
          %263 = vsyncadd [#allocation6], %s262
          %s264 = sshll.u32 [#allocation5], 4
          %s265 = int_to_ptr.vmem [resolvable:$true] %s264
          %270 = dma.hbm_to_vmem [thread:$0]  %s1, 512, %s265, [#allocation6], 128, 128, 8
        $region16: #{tpu_custom_call.1} parent=11 // pred_fallthru
          _
        // Predicated region
        $region17: #{tpu_custom_call.1} parent=11 // pred_check
          %p271 = pneg %p91
        $region18: #{tpu_custom_call.1} parent=11 // pred_check_branch
          %273 = sbr.rel (%p271) target = $region20
        $region19: #{tpu_custom_call.1} parent=11 // pred_region
          %s275 = ssub.s32 512, 512
          %276 = vsyncadd [#allocation6], %s275
          %s277 = sshll.u32 [#allocation7], 4
          %s278 = int_to_ptr.vmem [resolvable:$true] %s277
          %283 = dma.hbm_to_vmem [thread:$0]  %s2, 512, %s278, [#allocation6], 128, 128, 8
        $region20: #{tpu_custom_call.1} parent=11 // pred_fallthru
          _
        // Predicated region
        $region21: #{tpu_custom_call.1} parent=11 // pred_check
          %p284 = pneg %p112
        $region22: #{tpu_custom_call.1} parent=11 // pred_check_branch
          %286 = sbr.rel (%p284) target = $region24
        $region23: #{tpu_custom_call.1} parent=11 // pred_region
          %s288 = ssub.s32 512, 512
          %289 = vsyncadd [#allocation9], %s288
          %s290 = sshll.u32 [#allocation8], 4
          %s291 = int_to_ptr.vmem [resolvable:$true] %s290
          %296 = dma.hbm_to_vmem [thread:$0]  %s3, 512, %s291, [#allocation9], 128, 128, 8
        $region24: #{tpu_custom_call.1} parent=11 // pred_fallthru
          _
        // Predicated region
        $region25: #{tpu_custom_call.1} parent=11 // pred_check
          %p297 = pneg %p133
        $region26: #{tpu_custom_call.1} parent=11 // pred_check_branch
          %299 = sbr.rel (%p297) target = $region28
        $region27: #{tpu_custom_call.1} parent=11 // pred_region
          _
        $region28: #{tpu_custom_call.1} parent=11 // pred_fallthru
          _
        // Predicated region
        $region29: #{tpu_custom_call.1} parent=11 // pred_check
          %p300 = pneg %p154
        $region30: #{tpu_custom_call.1} parent=11 // pred_check_branch
          %302 = sbr.rel (%p300) target = $region32
        $region31: #{tpu_custom_call.1} parent=11 // pred_region
          _
        $region32: #{tpu_custom_call.1} parent=11 // pred_fallthru
          _
        // Predicated region
        $region33: #{tpu_custom_call.1} parent=11 // pred_check
          %p303 = pneg %p175
        $region34: #{tpu_custom_call.1} parent=11 // pred_check_branch
          %305 = sbr.rel (%p303) target = $region36
        $region35: #{tpu_custom_call.1} parent=11 // pred_region
          _
        $region36: #{tpu_custom_call.1} parent=11 // pred_fallthru
          _
        // Predicated region
        $region37: #{tpu_custom_call.1} parent=11 // pred_check
          %p306 = pneg %p196
        $region38: #{tpu_custom_call.1} parent=11 // pred_check_branch
          %308 = sbr.rel (%p306) target = $region40
        $region39: #{tpu_custom_call.1} parent=11 // pred_region
          %s310 = ssub.s32 512, 512
          %311 = vsyncadd [#allocation9], %s310
          %s312 = sshll.u32 [#allocation10], 4
          %s313 = int_to_ptr.vmem [resolvable:$true] %s312
          %318 = dma.hbm_to_vmem [thread:$0]  %s7, 512, %s313, [#allocation9], 128, 128, 8
        $region40: #{tpu_custom_call.1} parent=11 // pred_fallthru
          _
        // Predicated region
        $region41: #{tpu_custom_call.1} parent=11 // pred_check
          %p319 = pneg %p217
        $region42: #{tpu_custom_call.1} parent=11 // pred_check_branch
          %321 = sbr.rel (%p319) target = $region44
        $region43: #{tpu_custom_call.1} parent=11 // pred_region
          _
        $region44: #{tpu_custom_call.1} parent=11 // pred_fallthru
          _
      $region12: #{tpu_custom_call.1} parent=5 // pred_fallthru
        _
      %p322 = scmp.lt.s32.totalorder %s23, 2
      // Predicated region
      $region45: #{tpu_custom_call.1} parent=5 // pred_check
        %p323 = pneg %p322
      $region46: #{tpu_custom_call.1} parent=5 // pred_check_branch
        %325 = sbr.rel (%p323) target = $region48
      $region47: #{tpu_custom_call.1} parent=5 // pred_region
        // Predicated region
        $region49: #{tpu_custom_call.1} parent=47 // pred_check
          %p326 = pneg %p43
        $region50: #{tpu_custom_call.1} parent=47 // pred_check_branch
          %328 = sbr.rel (%p326) target = $region52
        $region51: #{tpu_custom_call.1} parent=47 // pred_region
          %s329 = sand.u32 %s33, 1
          %s330 = scalar_lea.sflag [#allocation3], %s329
          %s331 = sand.u32 %s33, 1
          %s332 = smul.addr %s331, 8
          %s333 = scalar_lea.vmem [#allocation2], %s332
          %s335 = ssub.s32 128, 128
          %336 = vsyncadd %s330, %s335
          %s337 = smul.addr %s23, 128
          %s338 = scalar_lea.hbm %s0, %s337
          %s340 = sshll.u32 %s333, 4
          %s341 = int_to_ptr.vmem [resolvable:$true] %s340
          %343 = dma.hbm_to_vmem [thread:$0]  %s338, 128, %s341, %s330
        $region52: #{tpu_custom_call.1} parent=47 // pred_fallthru
          _
      $region48: #{tpu_custom_call.1} parent=5 // pred_fallthru
        _
      %p344 = scmp.le.s32.totalorder 1, %s23
      %p345 = scmp.lt.s32.totalorder %s23, 3
      %p346 = pnand %p344, %p345
      %p347 = pneg %p346
      // Predicated region
      $region53: #{tpu_custom_call.1} parent=5 // pred_check
        _
      $region54: #{tpu_custom_call.1} parent=5 // pred_check_branch
        %349 = sbr.rel (%p346) target = $region56
      $region55: #{tpu_custom_call.1} parent=5 // pred_region
        %s350 = ssub.s32 %s23, 1
        %s351 = sand.u32 %s36, 1
        %s352 = scalar_lea.sflag [#allocation3], %s351
        %s353 = sand.u32 %s36, 1
        %s354 = smul.addr %s353, 8
        %s355 = scalar_lea.vmem [#allocation2], %s354
        // Predicated region
        $region57: #{tpu_custom_call.1} parent=55 // pred_check
          %p356 = pneg %p49
        $region58: #{tpu_custom_call.1} parent=55 // pred_check_branch
          %358 = sbr.rel (%p356) target = $region60
        $region59: #{tpu_custom_call.1} parent=55 // pred_region
          %359 = dma.done %s352, 128
        $region60: #{tpu_custom_call.1} parent=55 // pred_fallthru
          _
        // Predicated region
        $region61: #{tpu_custom_call.1} parent=55 // pred_check
          %p360 = pneg %p70
        $region62: #{tpu_custom_call.1} parent=55 // pred_check_branch
          %362 = sbr.rel (%p360) target = $region64
        $region63: #{tpu_custom_call.1} parent=55 // pred_region
          %363 = dma.done [#allocation6], 512
        $region64: #{tpu_custom_call.1} parent=55 // pred_fallthru
          _
        // Predicated region
        $region65: #{tpu_custom_call.1} parent=55 // pred_check
          %p364 = pneg %p91
        $region66: #{tpu_custom_call.1} parent=55 // pred_check_branch
          %366 = sbr.rel (%p364) target = $region68
        $region67: #{tpu_custom_call.1} parent=55 // pred_region
          %367 = dma.done [#allocation6], 512
        $region68: #{tpu_custom_call.1} parent=55 // pred_fallthru
          _
        // Predicated region
        $region69: #{tpu_custom_call.1} parent=55 // pred_check
          %p368 = pneg %p112
        $region70: #{tpu_custom_call.1} parent=55 // pred_check_branch
          %370 = sbr.rel (%p368) target = $region72
        $region71: #{tpu_custom_call.1} parent=55 // pred_region
          %371 = dma.done [#allocation9], 512
        $region72: #{tpu_custom_call.1} parent=55 // pred_fallthru
          _
        // Predicated region
        $region73: #{tpu_custom_call.1} parent=55 // pred_check
          %p372 = pneg %p196
        $region74: #{tpu_custom_call.1} parent=55 // pred_check_branch
          %374 = sbr.rel (%p372) target = $region76
        $region75: #{tpu_custom_call.1} parent=55 // pred_region
          %375 = dma.done [#allocation9], 512
        $region76: #{tpu_custom_call.1} parent=55 // pred_fallthru
          _
        %s376 = sand.u32 %s36, 1
        %s377 = scalar_lea.sflag [#allocation3], %s376
        %s378 = sand.u32 %s36, 1
        %s379 = smul.addr %s378, 8
        %s380 = scalar_lea.vmem [#allocation2], %s379
        %p381 = pneg %p49
        %p382 = pneg %p46
        %p383 = pneg %p70
        %p384 = pneg %p67
        %p385 = pneg %p91
        %p386 = pneg %p88
        %p387 = pneg %p112
        %p388 = pneg %p109
        %p389 = pneg %p133
        %p390 = pneg %p130
        %p391 = pneg %p154
        %p392 = pneg %p151
        %p393 = pneg %p175
        %p394 = pneg %p172
        %p395 = pneg %p196
        %p396 = pneg %p193
        %p397 = pneg %p217
        %p398 = pneg %p214
        %p399 = pneg %p243
        %p400 = pneg %p240
        %s401 = sand.u32 %s230, 1
        %s402 = scalar_lea.sflag [#allocation4], %s401
        %s403 = sand.u32 %s230, 1
        %s404 = smul.addr %s403, 8
        %s405 = scalar_lea.vmem [#allocation11], %s404
        %v406 = vld [vmem:[%s355] sm:$0xff]
        %v407 = vld [vmem:[#allocation5] sm:$0xff]
        %v408 = vld [vmem:[#allocation5 + $0x8] sm:$0xff]
        %v409 = vld [vmem:[#allocation5 + $0x10] sm:$0xff]
        %v410 = vld [vmem:[#allocation5 + $0x18] sm:$0xff]
        %v411 = vld [vmem:[%s4] sm:$0x1]
        %v413 = vlaneseq
        %v414 = vshrl.u32 %v413, 7
        %v415 = vsub.s32 0, %v414
        %v416 = vrot.slane %v411, %v415
        %vm418 = vcmask 261120
        %v420 = vsel %vm418, %v406, 0
        %422 = vmatprep.subr.mxu0 0.0
        %423 = vmatpush1.msra.mxu0 0.0
        %424 = vmatprep.subr.mxu0 0.0
        %425 = vmatpush1.msra.mxu0 0.0
        %426 = vmatprep.subr.mxu0 0.0
        %427 = vmatpush1.msra.mxu0 0.0
        %428 = vmatprep.subr.mxu0 0.0
        %429 = vmatpush1.msra.mxu0 0.0
        %430 = vmatprep.subr.mxu0 0.0
        %431 = vmatpush1.msra.mxu0 0.0
        %432 = vmatprep.subr.mxu0 0.0
        %433 = vmatpush1.msra.mxu0 0.0
        %434 = vmatprep.subr.mxu0 0.0
        %435 = vmatpush1.msra.mxu0 0.0
        %436 = vmatprep.subr.mxu0 0.0
        %437 = vmatpush1.msra.mxu0 0.0
        %438 = vmatprep.subr.mxu0 0.0
        %439 = vmatpush1.msra.mxu0 0.0
        %440 = vmatprep.subr.mxu0 0.0
        %441 = vmatpush1.msra.mxu0 0.0
        %442 = vmatprep.subr.mxu0 0.0
        %443 = vmatpush1.msra.mxu0 0.0
        %444 = vmatprep.subr.mxu0 0.0
        %445 = vmatpush1.msra.mxu0 0.0
        %446 = vmatprep.subr.mxu0 0.0
        %447 = vmatpush1.msra.mxu0 %v410
        %448 = vmatprep.subr.mxu0 0.0
        %449 = vmatpush1.msra.mxu0 %v409
        %450 = vmatprep.subr.mxu0 0.0
        %451 = vmatpush1.msra.mxu0 %v408
        %452 = vmatprep.subr.mxu0 0.0
        %453 = vmatpush1.msra.mxu0 %v407
        %454 = vmatprep.subr.mxu0 0.0
        %455 = vmatpush2.msra.mxu0 0.0
        %456 = vmatprep.subr.mxu0 0.0
        %457 = vmatpush2.msra.mxu0 0.0
        %458 = vmatprep.subr.mxu0 0.0
        %459 = vmatpush2.msra.mxu0 0.0
        %460 = vmatprep.subr.mxu0 0.0
        %461 = vmatpush2.msra.mxu0 0.0
        %462 = vmatprep.subr.mxu0 0.0
        %463 = vmatpush2.msra.mxu0 0.0
        %464 = vmatprep.subr.mxu0 0.0
        %465 = vmatpush2.msra.mxu0 0.0
        %466 = vmatprep.subr.mxu0 0.0
        %467 = vmatpush2.msra.mxu0 0.0
        %468 = vmatprep.subr.mxu0 0.0
        %469 = vmatpush2.msra.mxu0 0.0
        %470 = vmatprep.subr.mxu0 0.0
        %471 = vmatpush2.msra.mxu0 0.0
        %472 = vmatprep.subr.mxu0 0.0
        %473 = vmatpush2.msra.mxu0 0.0
        %474 = vmatprep.subr.mxu0 0.0
        %475 = vmatpush2.msra.mxu0 0.0
        %476 = vmatprep.subr.mxu0 0.0
        %477 = vmatpush2.msra.mxu0 0.0
        %478 = vmatprep.subr.mxu0 0.0
        %479 = vmatpush2.msra.mxu0 0.0
        %480 = vmatprep.subr.mxu0 0.0
        %481 = vmatpush2.msra.mxu0 0.0
        %482 = vmatprep.subr.mxu0 0.0
        %483 = vmatpush2.msra.mxu0 0.0
        %484 = vmatprep.subr.mxu0 0.0
        %485 = vmatpush2.msra.mxu0 0.0
        %486 = vmatprep.mubr.f32.mxu0 0.0
        %487 = vmatmul.mubr.f32.gmra.mxu0 %v420
        %v488 = vpop.f32.mrf.mxu0
        %v489 = vadd.f32 %v416, %v488
        %v490 = vpop.f32.mrf.mxu0
        %491 = vdwg.mxu0
        %v492 = vld [vmem:[#allocation7] sm:$0xff]
        %v493 = vld [vmem:[#allocation7 + $0x8] sm:$0xff]
        %v494 = vld [vmem:[#allocation7 + $0x10] sm:$0xff]
        %v495 = vld [vmem:[#allocation7 + $0x18] sm:$0xff]
        %v496 = vld [vmem:[%s5] sm:$0x1]
        %v498 = vlaneseq
        %v499 = vshrl.u32 %v498, 7
        %v500 = vsub.s32 0, %v499
        %v501 = vrot.slane %v496, %v500
        %503 = vmatprep.subr.mxu0 0.0
        %504 = vmatpush1.msra.mxu0 0.0
        %505 = vmatprep.subr.mxu0 0.0
        %506 = vmatpush1.msra.mxu0 0.0
        %507 = vmatprep.subr.mxu0 0.0
        %508 = vmatpush1.msra.mxu0 0.0
        %509 = vmatprep.subr.mxu0 0.0
        %510 = vmatpush1.msra.mxu0 0.0
        %511 = vmatprep.subr.mxu0 0.0
        %512 = vmatpush1.msra.mxu0 0.0
        %513 = vmatprep.subr.mxu0 0.0
        %514 = vmatpush1.msra.mxu0 0.0
        %515 = vmatprep.subr.mxu0 0.0
        %516 = vmatpush1.msra.mxu0 0.0
        %517 = vmatprep.subr.mxu0 0.0
        %518 = vmatpush1.msra.mxu0 0.0
        %519 = vmatprep.subr.mxu0 0.0
        %520 = vmatpush1.msra.mxu0 0.0
        %521 = vmatprep.subr.mxu0 0.0
        %522 = vmatpush1.msra.mxu0 0.0
        %523 = vmatprep.subr.mxu0 0.0
        %524 = vmatpush1.msra.mxu0 0.0
        %525 = vmatprep.subr.mxu0 0.0
        %526 = vmatpush1.msra.mxu0 0.0
        %527 = vmatprep.subr.mxu0 0.0
        %528 = vmatpush1.msra.mxu0 %v495
        %529 = vmatprep.subr.mxu0 0.0
        %530 = vmatpush1.msra.mxu0 %v494
        %531 = vmatprep.subr.mxu0 0.0
        %532 = vmatpush1.msra.mxu0 %v493
        %533 = vmatprep.subr.mxu0 0.0
        %534 = vmatpush1.msra.mxu0 %v492
        %535 = vmatprep.subr.mxu0 0.0
        %536 = vmatpush2.msra.mxu0 0.0
        %537 = vmatprep.subr.mxu0 0.0
        %538 = vmatpush2.msra.mxu0 0.0
        %539 = vmatprep.subr.mxu0 0.0
        %540 = vmatpush2.msra.mxu0 0.0
        %541 = vmatprep.subr.mxu0 0.0
        %542 = vmatpush2.msra.mxu0 0.0
        %543 = vmatprep.subr.mxu0 0.0
        %544 = vmatpush2.msra.mxu0 0.0
        %545 = vmatprep.subr.mxu0 0.0
        %546 = vmatpush2.msra.mxu0 0.0
        %547 = vmatprep.subr.mxu0 0.0
        %548 = vmatpush2.msra.mxu0 0.0
        %549 = vmatprep.subr.mxu0 0.0
        %550 = vmatpush2.msra.mxu0 0.0
        %551 = vmatprep.subr.mxu0 0.0
        %552 = vmatpush2.msra.mxu0 0.0
        %553 = vmatprep.subr.mxu0 0.0
        %554 = vmatpush2.msra.mxu0 0.0
        %555 = vmatprep.subr.mxu0 0.0
        %556 = vmatpush2.msra.mxu0 0.0
        %557 = vmatprep.subr.mxu0 0.0
        %558 = vmatpush2.msra.mxu0 0.0
        %559 = vmatprep.subr.mxu0 0.0
        %560 = vmatpush2.msra.mxu0 0.0
        %561 = vmatprep.subr.mxu0 0.0
        %562 = vmatpush2.msra.mxu0 0.0
        %563 = vmatprep.subr.mxu0 0.0
        %564 = vmatpush2.msra.mxu0 0.0
        %565 = vmatprep.subr.mxu0 0.0
        %566 = vmatpush2.msra.mxu0 0.0
        %567 = vmatprep.mubr.f32.mxu0 0.0
        %568 = vmatmul.mubr.f32.gmra.mxu0 %v420
        %v569 = vpop.f32.mrf.mxu0
        %v570 = vadd.f32 %v501, %v569
        %v571 = vpop.f32.mrf.mxu0
        %572 = vdwg.mxu0
        %v573 = vld [vmem:[#allocation8] sm:$0xff]
        %v574 = vld [vmem:[#allocation8 + $0x8] sm:$0xff]
        %v575 = vld [vmem:[#allocation8 + $0x10] sm:$0xff]
        %v576 = vld [vmem:[#allocation8 + $0x18] sm:$0xff]
        %v577 = vld [vmem:[%s6] sm:$0x1]
        %v579 = vlaneseq
        %v580 = vshrl.u32 %v579, 7
        %v581 = vsub.s32 0, %v580
        %v582 = vrot.slane %v577, %v581
        %584 = vmatprep.subr.mxu0 0.0
        %585 = vmatpush1.msra.mxu0 0.0
        %586 = vmatprep.subr.mxu0 0.0
        %587 = vmatpush1.msra.mxu0 0.0
        %588 = vmatprep.subr.mxu0 0.0
        %589 = vmatpush1.msra.mxu0 0.0
        %590 = vmatprep.subr.mxu0 0.0
        %591 = vmatpush1.msra.mxu0 0.0
        %592 = vmatprep.subr.mxu0 0.0
        %593 = vmatpush1.msra.mxu0 0.0
        %594 = vmatprep.subr.mxu0 0.0
        %595 = vmatpush1.msra.mxu0 0.0
        %596 = vmatprep.subr.mxu0 0.0
        %597 = vmatpush1.msra.mxu0 0.0
        %598 = vmatprep.subr.mxu0 0.0
        %599 = vmatpush1.msra.mxu0 0.0
        %600 = vmatprep.subr.mxu0 0.0
        %601 = vmatpush1.msra.mxu0 0.0
        %602 = vmatprep.subr.mxu0 0.0
        %603 = vmatpush1.msra.mxu0 0.0
        %604 = vmatprep.subr.mxu0 0.0
        %605 = vmatpush1.msra.mxu0 0.0
        %606 = vmatprep.subr.mxu0 0.0
        %607 = vmatpush1.msra.mxu0 0.0
        %608 = vmatprep.subr.mxu0 0.0
        %609 = vmatpush1.msra.mxu0 %v576
        %610 = vmatprep.subr.mxu0 0.0
        %611 = vmatpush1.msra.mxu0 %v575
        %612 = vmatprep.subr.mxu0 0.0
        %613 = vmatpush1.msra.mxu0 %v574
        %614 = vmatprep.subr.mxu0 0.0
        %615 = vmatpush1.msra.mxu0 %v573
        %616 = vmatprep.subr.mxu0 0.0
        %617 = vmatpush2.msra.mxu0 0.0
        %618 = vmatprep.subr.mxu0 0.0
        %619 = vmatpush2.msra.mxu0 0.0
        %620 = vmatprep.subr.mxu0 0.0
        %621 = vmatpush2.msra.mxu0 0.0
        %622 = vmatprep.subr.mxu0 0.0
        %623 = vmatpush2.msra.mxu0 0.0
        %624 = vmatprep.subr.mxu0 0.0
        %625 = vmatpush2.msra.mxu0 0.0
        %626 = vmatprep.subr.mxu0 0.0
        %627 = vmatpush2.msra.mxu0 0.0
        %628 = vmatprep.subr.mxu0 0.0
        %629 = vmatpush2.msra.mxu0 0.0
        %630 = vmatprep.subr.mxu0 0.0
        %631 = vmatpush2.msra.mxu0 0.0
        %632 = vmatprep.subr.mxu0 0.0
        %633 = vmatpush2.msra.mxu0 0.0
        %634 = vmatprep.subr.mxu0 0.0
        %635 = vmatpush2.msra.mxu0 0.0
        %636 = vmatprep.subr.mxu0 0.0
        %637 = vmatpush2.msra.mxu0 0.0
        %638 = vmatprep.subr.mxu0 0.0
        %639 = vmatpush2.msra.mxu0 0.0
        %640 = vmatprep.subr.mxu0 0.0
        %641 = vmatpush2.msra.mxu0 0.0
        %642 = vmatprep.subr.mxu0 0.0
        %643 = vmatpush2.msra.mxu0 0.0
        %644 = vmatprep.subr.mxu0 0.0
        %645 = vmatpush2.msra.mxu0 0.0
        %646 = vmatprep.subr.mxu0 0.0
        %647 = vmatpush2.msra.mxu0 0.0
        %648 = vmatprep.mubr.f32.mxu0 0.0
        %649 = vmatmul.mubr.f32.gmra.mxu0 %v420
        %v650 = vpop.f32.mrf.mxu0
        %v651 = vadd.f32 %v582, %v650
        %v652 = vpop.f32.mrf.mxu0
        %653 = vdwg.mxu0
        %vm654 = vcmask 64512
        %v656 = vsel %vm654, %v489, 0
        %v659 = vsel %vm654, %v570, 0
        %661 = vmatprep.subr.mxu0 0.0
        %662 = vmatpush1.xpose.msra.mxu0 0.0
        %663 = vmatprep.subr.mxu0 0.0
        %664 = vmatpush1.xpose.msra.mxu0 0.0
        %665 = vmatprep.subr.mxu0 0.0
        %666 = vmatpush1.xpose.msra.mxu0 0.0
        %667 = vmatprep.subr.mxu0 0.0
        %668 = vmatpush1.xpose.msra.mxu0 0.0
        %669 = vmatprep.subr.mxu0 0.0
        %670 = vmatpush1.xpose.msra.mxu0 0.0
        %671 = vmatprep.subr.mxu0 0.0
        %672 = vmatpush1.xpose.msra.mxu0 0.0
        %673 = vmatprep.subr.mxu0 0.0
        %674 = vmatpush1.xpose.msra.mxu0 0.0
        %675 = vmatprep.subr.mxu0 0.0
        %676 = vmatpush1.xpose.msra.mxu0 0.0
        %677 = vmatprep.subr.mxu0 0.0
        %678 = vmatpush1.xpose.msra.mxu0 0.0
        %679 = vmatprep.subr.mxu0 0.0
        %680 = vmatpush1.xpose.msra.mxu0 0.0
        %681 = vmatprep.subr.mxu0 0.0
        %682 = vmatpush1.xpose.msra.mxu0 0.0
        %683 = vmatprep.subr.mxu0 0.0
        %684 = vmatpush1.xpose.msra.mxu0 0.0
        %685 = vmatprep.subr.mxu0 0.0
        %686 = vmatpush1.xpose.msra.mxu0 0.0
        %687 = vmatprep.subr.mxu0 0.0
        %688 = vmatpush1.xpose.msra.mxu0 0.0
        %689 = vmatprep.subr.mxu0 0.0
        %690 = vmatpush1.xpose.msra.mxu0 0.0
        %691 = vmatprep.subr.mxu0 0.0
        %692 = vmatpush1.xpose.msra.mxu0 %v659
        %693 = vmatprep.subr.mxu0 0.0
        %694 = vmatpush2.xpose.msra.mxu0 0.0
        %695 = vmatprep.subr.mxu0 0.0
        %696 = vmatpush2.xpose.msra.mxu0 0.0
        %697 = vmatprep.subr.mxu0 0.0
        %698 = vmatpush2.xpose.msra.mxu0 0.0
        %699 = vmatprep.subr.mxu0 0.0
        %700 = vmatpush2.xpose.msra.mxu0 0.0
        %701 = vmatprep.subr.mxu0 0.0
        %702 = vmatpush2.xpose.msra.mxu0 0.0
        %703 = vmatprep.subr.mxu0 0.0
        %704 = vmatpush2.xpose.msra.mxu0 0.0
        %705 = vmatprep.subr.mxu0 0.0
        %706 = vmatpush2.xpose.msra.mxu0 0.0
        %707 = vmatprep.subr.mxu0 0.0
        %708 = vmatpush2.xpose.msra.mxu0 0.0
        %709 = vmatprep.subr.mxu0 0.0
        %710 = vmatpush2.xpose.msra.mxu0 0.0
        %711 = vmatprep.subr.mxu0 0.0
        %712 = vmatpush2.xpose.msra.mxu0 0.0
        %713 = vmatprep.subr.mxu0 0.0
        %714 = vmatpush2.xpose.msra.mxu0 0.0
        %715 = vmatprep.subr.mxu0 0.0
        %716 = vmatpush2.xpose.msra.mxu0 0.0
        %717 = vmatprep.subr.mxu0 0.0
        %718 = vmatpush2.xpose.msra.mxu0 0.0
        %719 = vmatprep.subr.mxu0 0.0
        %720 = vmatpush2.xpose.msra.mxu0 0.0
        %721 = vmatprep.subr.mxu0 0.0
        %722 = vmatpush2.xpose.msra.mxu0 0.0
        %723 = vmatprep.subr.mxu0 0.0
        %724 = vmatpush2.xpose.msra.mxu0 0.0
        %725 = vmatprep.mubr.f32.mxu0 0.0
        %726 = vmatmul.mubr.f32.gmra.mxu0 %v656
        %v727 = vpop.f32.mrf.mxu0
        %v728 = vadd.f32 0.0, %v727
        %v729 = vpop.f32.mrf.mxu0
        %730 = vdwg.mxu0
        %v731 = vmul.f32 %v728, 0.35355338
        %v732 = vsel %vm654, %v731, -inf
        %733 = vmax.xlane.f32.xlu0 %v732
        %v734 = vpop.xlane.xlu0 %733
        %v735 = vsub.f32 %v731, %v734
        %v736 = vmul.f32 %v735, 1.442695
        %v737 = vpow.pop %v736
        %v738 = vsel %vm654, %v737, 0.0
        %739 = vadd.xlane.f32.xlu0 %v738
        %v740 = vpop.xlane.xlu0 %739
        %v741 = vrcp.pop %v740
        %v742 = vmul.f32 %v737, %v741
        %v744 = vsel %vm654, %v742, 0
        %746 = vmatprep.subr.mxu0 0.0
        %747 = vmatpush1.msra.mxu0 0.0
        %748 = vmatprep.subr.mxu0 0.0
        %749 = vmatpush1.msra.mxu0 0.0
        %750 = vmatprep.subr.mxu0 0.0
        %751 = vmatpush1.msra.mxu0 0.0
        %752 = vmatprep.subr.mxu0 0.0
        %753 = vmatpush1.msra.mxu0 0.0
        %754 = vmatprep.subr.mxu0 0.0
        %755 = vmatpush1.msra.mxu0 0.0
        %756 = vmatprep.subr.mxu0 0.0
        %757 = vmatpush1.msra.mxu0 0.0
        %758 = vmatprep.subr.mxu0 0.0
        %759 = vmatpush1.msra.mxu0 0.0
        %760 = vmatprep.subr.mxu0 0.0
        %761 = vmatpush1.msra.mxu0 0.0
        %762 = vmatprep.subr.mxu0 0.0
        %763 = vmatpush1.msra.mxu0 0.0
        %764 = vmatprep.subr.mxu0 0.0
        %765 = vmatpush1.msra.mxu0 0.0
        %766 = vmatprep.subr.mxu0 0.0
        %767 = vmatpush1.msra.mxu0 0.0
        %768 = vmatprep.subr.mxu0 0.0
        %769 = vmatpush1.msra.mxu0 0.0
        %770 = vmatprep.subr.mxu0 0.0
        %771 = vmatpush1.msra.mxu0 0.0
        %772 = vmatprep.subr.mxu0 0.0
        %773 = vmatpush1.msra.mxu0 0.0
        %774 = vmatprep.subr.mxu0 0.0
        %775 = vmatpush1.msra.mxu0 0.0
        %776 = vmatprep.subr.mxu0 0.0
        %777 = vmatpush1.msra.mxu0 %v651
        %778 = vmatprep.subr.mxu0 0.0
        %779 = vmatpush2.msra.mxu0 0.0
        %780 = vmatprep.subr.mxu0 0.0
        %781 = vmatpush2.msra.mxu0 0.0
        %782 = vmatprep.subr.mxu0 0.0
        %783 = vmatpush2.msra.mxu0 0.0
        %784 = vmatprep.subr.mxu0 0.0
        %785 = vmatpush2.msra.mxu0 0.0
        %786 = vmatprep.subr.mxu0 0.0
        %787 = vmatpush2.msra.mxu0 0.0
        %788 = vmatprep.subr.mxu0 0.0
        %789 = vmatpush2.msra.mxu0 0.0
        %790 = vmatprep.subr.mxu0 0.0
        %791 = vmatpush2.msra.mxu0 0.0
        %792 = vmatprep.subr.mxu0 0.0
        %793 = vmatpush2.msra.mxu0 0.0
        %794 = vmatprep.subr.mxu0 0.0
        %795 = vmatpush2.msra.mxu0 0.0
        %796 = vmatprep.subr.mxu0 0.0
        %797 = vmatpush2.msra.mxu0 0.0
        %798 = vmatprep.subr.mxu0 0.0
        %799 = vmatpush2.msra.mxu0 0.0
        %800 = vmatprep.subr.mxu0 0.0
        %801 = vmatpush2.msra.mxu0 0.0
        %802 = vmatprep.subr.mxu0 0.0
        %803 = vmatpush2.msra.mxu0 0.0
        %804 = vmatprep.subr.mxu0 0.0
        %805 = vmatpush2.msra.mxu0 0.0
        %806 = vmatprep.subr.mxu0 0.0
        %807 = vmatpush2.msra.mxu0 0.0
        %808 = vmatprep.subr.mxu0 0.0
        %809 = vmatpush2.msra.mxu0 0.0
        %810 = vmatprep.mubr.f32.mxu0 0.0
        %811 = vmatmul.mubr.f32.gmra.mxu0 %v744
        %v812 = vpop.f32.mrf.mxu0
        %v813 = vadd.f32 0.0, %v812
        %v814 = vpop.f32.mrf.mxu0
        %815 = vdwg.mxu0
        %v816 = vld [vmem:[#allocation10] sm:$0xff]
        %817 = vrot.lane.b32.xlu0 %v489, 120
        %v818 = vpop.permute.xlu0 %817
        %819 = vrot.lane.b32.xlu0 %v570, 120
        %v820 = vpop.permute.xlu0 %819
        %v821 = vsel %vm654, %v818, 0
        %v823 = vsel %vm654, %v820, 0
        %825 = vmatprep.subr.mxu0 0.0
        %826 = vmatpush1.xpose.msra.mxu0 0.0
        %827 = vmatprep.subr.mxu0 0.0
        %828 = vmatpush1.xpose.msra.mxu0 0.0
        %829 = vmatprep.subr.mxu0 0.0
        %830 = vmatpush1.xpose.msra.mxu0 0.0
        %831 = vmatprep.subr.mxu0 0.0
        %832 = vmatpush1.xpose.msra.mxu0 0.0
        %833 = vmatprep.subr.mxu0 0.0
        %834 = vmatpush1.xpose.msra.mxu0 0.0
        %835 = vmatprep.subr.mxu0 0.0
        %836 = vmatpush1.xpose.msra.mxu0 0.0
        %837 = vmatprep.subr.mxu0 0.0
        %838 = vmatpush1.xpose.msra.mxu0 0.0
        %839 = vmatprep.subr.mxu0 0.0
        %840 = vmatpush1.xpose.msra.mxu0 0.0
        %841 = vmatprep.subr.mxu0 0.0
        %842 = vmatpush1.xpose.msra.mxu0 0.0
        %843 = vmatprep.subr.mxu0 0.0
        %844 = vmatpush1.xpose.msra.mxu0 0.0
        %845 = vmatprep.subr.mxu0 0.0
        %846 = vmatpush1.xpose.msra.mxu0 0.0
        %847 = vmatprep.subr.mxu0 0.0
        %848 = vmatpush1.xpose.msra.mxu0 0.0
        %849 = vmatprep.subr.mxu0 0.0
        %850 = vmatpush1.xpose.msra.mxu0 0.0
        %851 = vmatprep.subr.mxu0 0.0
        %852 = vmatpush1.xpose.msra.mxu0 0.0
        %853 = vmatprep.subr.mxu0 0.0
        %854 = vmatpush1.xpose.msra.mxu0 0.0
        %855 = vmatprep.subr.mxu0 0.0
        %856 = vmatpush1.xpose.msra.mxu0 %v823
        %857 = vmatprep.subr.mxu0 0.0
        %858 = vmatpush2.xpose.msra.mxu0 0.0
        %859 = vmatprep.subr.mxu0 0.0
        %860 = vmatpush2.xpose.msra.mxu0 0.0
        %861 = vmatprep.subr.mxu0 0.0
        %862 = vmatpush2.xpose.msra.mxu0 0.0
        %863 = vmatprep.subr.mxu0 0.0
        %864 = vmatpush2.xpose.msra.mxu0 0.0
        %865 = vmatprep.subr.mxu0 0.0
        %866 = vmatpush2.xpose.msra.mxu0 0.0
        %867 = vmatprep.subr.mxu0 0.0
        %868 = vmatpush2.xpose.msra.mxu0 0.0
        %869 = vmatprep.subr.mxu0 0.0
        %870 = vmatpush2.xpose.msra.mxu0 0.0
        %871 = vmatprep.subr.mxu0 0.0
        %872 = vmatpush2.xpose.msra.mxu0 0.0
        %873 = vmatprep.subr.mxu0 0.0
        %874 = vmatpush2.xpose.msra.mxu0 0.0
        %875 = vmatprep.subr.mxu0 0.0
        %876 = vmatpush2.xpose.msra.mxu0 0.0
        %877 = vmatprep.subr.mxu0 0.0
        %878 = vmatpush2.xpose.msra.mxu0 0.0
        %879 = vmatprep.subr.mxu0 0.0
        %880 = vmatpush2.xpose.msra.mxu0 0.0
        %881 = vmatprep.subr.mxu0 0.0
        %882 = vmatpush2.xpose.msra.mxu0 0.0
        %883 = vmatprep.subr.mxu0 0.0
        %884 = vmatpush2.xpose.msra.mxu0 0.0
        %885 = vmatprep.subr.mxu0 0.0
        %886 = vmatpush2.xpose.msra.mxu0 0.0
        %887 = vmatprep.subr.mxu0 0.0
        %888 = vmatpush2.xpose.msra.mxu0 0.0
        %889 = vmatprep.mubr.f32.mxu0 0.0
        %890 = vmatmul.mubr.f32.gmra.mxu0 %v821
        %v891 = vpop.f32.mrf.mxu0
        %v892 = vadd.f32 0.0, %v891
        %v893 = vpop.f32.mrf.mxu0
        %894 = vdwg.mxu0
        %v895 = vmul.f32 %v892, 0.35355338
        %v896 = vsel %vm654, %v895, -inf
        %897 = vmax.xlane.f32.xlu0 %v896
        %v898 = vpop.xlane.xlu0 %897
        %v899 = vsub.f32 %v895, %v898
        %v900 = vmul.f32 %v899, 1.442695
        %v901 = vpow.pop %v900
        %v902 = vsel %vm654, %v901, 0.0
        %903 = vadd.xlane.f32.xlu0 %v902
        %v904 = vpop.xlane.xlu0 %903
        %v905 = vrcp.pop %v904
        %v906 = vmul.f32 %v901, %v905
        %908 = vrot.lane.b32.xlu0 %v651, 120
        %v909 = vpop.permute.xlu0 %908
        %v912 = vsel %vm654, %v906, 0
        %914 = vmatprep.subr.mxu0 0.0
        %915 = vmatpush1.msra.mxu0 0.0
        %916 = vmatprep.subr.mxu0 0.0
        %917 = vmatpush1.msra.mxu0 0.0
        %918 = vmatprep.subr.mxu0 0.0
        %919 = vmatpush1.msra.mxu0 0.0
        %920 = vmatprep.subr.mxu0 0.0
        %921 = vmatpush1.msra.mxu0 0.0
        %922 = vmatprep.subr.mxu0 0.0
        %923 = vmatpush1.msra.mxu0 0.0
        %924 = vmatprep.subr.mxu0 0.0
        %925 = vmatpush1.msra.mxu0 0.0
        %926 = vmatprep.subr.mxu0 0.0
        %927 = vmatpush1.msra.mxu0 0.0
        %928 = vmatprep.subr.mxu0 0.0
        %929 = vmatpush1.msra.mxu0 0.0
        %930 = vmatprep.subr.mxu0 0.0
        %931 = vmatpush1.msra.mxu0 0.0
        %932 = vmatprep.subr.mxu0 0.0
        %933 = vmatpush1.msra.mxu0 0.0
        %934 = vmatprep.subr.mxu0 0.0
        %935 = vmatpush1.msra.mxu0 0.0
        %936 = vmatprep.subr.mxu0 0.0
        %937 = vmatpush1.msra.mxu0 0.0
        %938 = vmatprep.subr.mxu0 0.0
        %939 = vmatpush1.msra.mxu0 0.0
        %940 = vmatprep.subr.mxu0 0.0
        %941 = vmatpush1.msra.mxu0 0.0
        %942 = vmatprep.subr.mxu0 0.0
        %943 = vmatpush1.msra.mxu0 0.0
        %944 = vmatprep.subr.mxu0 0.0
        %945 = vmatpush1.msra.mxu0 %v909
        %946 = vmatprep.subr.mxu0 0.0
        %947 = vmatpush2.msra.mxu0 0.0
        %948 = vmatprep.subr.mxu0 0.0
        %949 = vmatpush2.msra.mxu0 0.0
        %950 = vmatprep.subr.mxu0 0.0
        %951 = vmatpush2.msra.mxu0 0.0
        %952 = vmatprep.subr.mxu0 0.0
        %953 = vmatpush2.msra.mxu0 0.0
        %954 = vmatprep.subr.mxu0 0.0
        %955 = vmatpush2.msra.mxu0 0.0
        %956 = vmatprep.subr.mxu0 0.0
        %957 = vmatpush2.msra.mxu0 0.0
        %958 = vmatprep.subr.mxu0 0.0
        %959 = vmatpush2.msra.mxu0 0.0
        %960 = vmatprep.subr.mxu0 0.0
        %961 = vmatpush2.msra.mxu0 0.0
        %962 = vmatprep.subr.mxu0 0.0
        %963 = vmatpush2.msra.mxu0 0.0
        %964 = vmatprep.subr.mxu0 0.0
        %965 = vmatpush2.msra.mxu0 0.0
        %966 = vmatprep.subr.mxu0 0.0
        %967 = vmatpush2.msra.mxu0 0.0
        %968 = vmatprep.subr.mxu0 0.0
        %969 = vmatpush2.msra.mxu0 0.0
        %970 = vmatprep.subr.mxu0 0.0
        %971 = vmatpush2.msra.mxu0 0.0
        %972 = vmatprep.subr.mxu0 0.0
        %973 = vmatpush2.msra.mxu0 0.0
        %974 = vmatprep.subr.mxu0 0.0
        %975 = vmatpush2.msra.mxu0 0.0
        %976 = vmatprep.subr.mxu0 0.0
        %977 = vmatpush2.msra.mxu0 0.0
        %978 = vmatprep.mubr.f32.mxu0 0.0
        %979 = vmatmul.mubr.f32.gmra.mxu0 %v912
        %v980 = vpop.f32.mrf.mxu0
        %v981 = vadd.f32 0.0, %v980
        %v982 = vpop.f32.mrf.mxu0
        %983 = vdwg.mxu0
        %v984 = vld [vmem:[#allocation10 + $0x8] sm:$0xff]
        %v986 = vsel %vm654, %v981, 0
        %988 = vmatprep.subr.mxu0 0.0
        %989 = vmatpush1.msra.mxu0 0.0
        %990 = vmatprep.subr.mxu0 0.0
        %991 = vmatpush1.msra.mxu0 0.0
        %992 = vmatprep.subr.mxu0 0.0
        %993 = vmatpush1.msra.mxu0 0.0
        %994 = vmatprep.subr.mxu0 0.0
        %995 = vmatpush1.msra.mxu0 0.0
        %996 = vmatprep.subr.mxu0 0.0
        %997 = vmatpush1.msra.mxu0 0.0
        %998 = vmatprep.subr.mxu0 0.0
        %999 = vmatpush1.msra.mxu0 0.0
        %1000 = vmatprep.subr.mxu0 0.0
        %1001 = vmatpush1.msra.mxu0 0.0
        %1002 = vmatprep.subr.mxu0 0.0
        %1003 = vmatpush1.msra.mxu0 0.0
        %1004 = vmatprep.subr.mxu0 0.0
        %1005 = vmatpush1.msra.mxu0 0.0
        %1006 = vmatprep.subr.mxu0 0.0
        %1007 = vmatpush1.msra.mxu0 0.0
        %1008 = vmatprep.subr.mxu0 0.0
        %1009 = vmatpush1.msra.mxu0 0.0
        %1010 = vmatprep.subr.mxu0 0.0
        %1011 = vmatpush1.msra.mxu0 0.0
        %1012 = vmatprep.subr.mxu0 0.0
        %1013 = vmatpush1.msra.mxu0 0.0
        %1014 = vmatprep.subr.mxu0 0.0
        %1015 = vmatpush1.msra.mxu0 0.0
        %1016 = vmatprep.subr.mxu0 0.0
        %1017 = vmatpush1.msra.mxu0 0.0
        %1018 = vmatprep.subr.mxu0 0.0
        %1019 = vmatpush1.msra.mxu0 %v984
        %1020 = vmatprep.subr.mxu0 0.0
        %1021 = vmatpush2.msra.mxu0 0.0
        %1022 = vmatprep.subr.mxu0 0.0
        %1023 = vmatpush2.msra.mxu0 0.0
        %1024 = vmatprep.subr.mxu0 0.0
        %1025 = vmatpush2.msra.mxu0 0.0
        %1026 = vmatprep.subr.mxu0 0.0
        %1027 = vmatpush2.msra.mxu0 0.0
        %1028 = vmatprep.subr.mxu0 0.0
        %1029 = vmatpush2.msra.mxu0 0.0
        %1030 = vmatprep.subr.mxu0 0.0
        %1031 = vmatpush2.msra.mxu0 0.0
        %1032 = vmatprep.subr.mxu0 0.0
        %1033 = vmatpush2.msra.mxu0 0.0
        %1034 = vmatprep.subr.mxu0 0.0
        %1035 = vmatpush2.msra.mxu0 0.0
        %1036 = vmatprep.subr.mxu0 0.0
        %1037 = vmatpush2.msra.mxu0 0.0
        %1038 = vmatprep.subr.mxu0 0.0
        %1039 = vmatpush2.msra.mxu0 0.0
        %1040 = vmatprep.subr.mxu0 0.0
        %1041 = vmatpush2.msra.mxu0 0.0
        %1042 = vmatprep.subr.mxu0 0.0
        %1043 = vmatpush2.msra.mxu0 0.0
        %1044 = vmatprep.subr.mxu0 0.0
        %1045 = vmatpush2.msra.mxu0 0.0
        %1046 = vmatprep.subr.mxu0 0.0
        %1047 = vmatpush2.msra.mxu0 0.0
        %1048 = vmatprep.subr.mxu0 0.0
        %1049 = vmatpush2.msra.mxu0 0.0
        %1050 = vmatprep.subr.mxu0 0.0
        %1051 = vmatpush2.msra.mxu0 0.0
        %1052 = vmatprep.mubr.f32.mxu0 0.0
        %1053 = vmatmul.mubr.f32.gmra.mxu0 %v986
        %v1054 = vpop.f32.mrf.mxu0
        %v1055 = vadd.f32 0.0, %v1054
        %v1056 = vpop.f32.mrf.mxu0
        %1057 = vdwg.mxu0
        %v1059 = vsel %vm654, %v813, 0
        %1061 = vmatprep.subr.mxu0 0.0
        %1062 = vmatpush1.msra.mxu0 0.0
        %1063 = vmatprep.subr.mxu0 0.0
        %1064 = vmatpush1.msra.mxu0 0.0
        %1065 = vmatprep.subr.mxu0 0.0
        %1066 = vmatpush1.msra.mxu0 0.0
        %1067 = vmatprep.subr.mxu0 0.0
        %1068 = vmatpush1.msra.mxu0 0.0
        %1069 = vmatprep.subr.mxu0 0.0
        %1070 = vmatpush1.msra.mxu0 0.0
        %1071 = vmatprep.subr.mxu0 0.0
        %1072 = vmatpush1.msra.mxu0 0.0
        %1073 = vmatprep.subr.mxu0 0.0
        %1074 = vmatpush1.msra.mxu0 0.0
        %1075 = vmatprep.subr.mxu0 0.0
        %1076 = vmatpush1.msra.mxu0 0.0
        %1077 = vmatprep.subr.mxu0 0.0
        %1078 = vmatpush1.msra.mxu0 0.0
        %1079 = vmatprep.subr.mxu0 0.0
        %1080 = vmatpush1.msra.mxu0 0.0
        %1081 = vmatprep.subr.mxu0 0.0
        %1082 = vmatpush1.msra.mxu0 0.0
        %1083 = vmatprep.subr.mxu0 0.0
        %1084 = vmatpush1.msra.mxu0 0.0
        %1085 = vmatprep.subr.mxu0 0.0
        %1086 = vmatpush1.msra.mxu0 0.0
        %1087 = vmatprep.subr.mxu0 0.0
        %1088 = vmatpush1.msra.mxu0 0.0
        %1089 = vmatprep.subr.mxu0 0.0
        %1090 = vmatpush1.msra.mxu0 0.0
        %1091 = vmatprep.subr.mxu0 0.0
        %1092 = vmatpush1.msra.mxu0 %v816
        %1093 = vmatprep.subr.mxu0 0.0
        %1094 = vmatpush2.msra.mxu0 0.0
        %1095 = vmatprep.subr.mxu0 0.0
        %1096 = vmatpush2.msra.mxu0 0.0
        %1097 = vmatprep.subr.mxu0 0.0
        %1098 = vmatpush2.msra.mxu0 0.0
        %1099 = vmatprep.subr.mxu0 0.0
        %1100 = vmatpush2.msra.mxu0 0.0
        %1101 = vmatprep.subr.mxu0 0.0
        %1102 = vmatpush2.msra.mxu0 0.0
        %1103 = vmatprep.subr.mxu0 0.0
        %1104 = vmatpush2.msra.mxu0 0.0
        %1105 = vmatprep.subr.mxu0 0.0
        %1106 = vmatpush2.msra.mxu0 0.0
        %1107 = vmatprep.subr.mxu0 0.0
        %1108 = vmatpush2.msra.mxu0 0.0
        %1109 = vmatprep.subr.mxu0 0.0
        %1110 = vmatpush2.msra.mxu0 0.0
        %1111 = vmatprep.subr.mxu0 0.0
        %1112 = vmatpush2.msra.mxu0 0.0
        %1113 = vmatprep.subr.mxu0 0.0
        %1114 = vmatpush2.msra.mxu0 0.0
        %1115 = vmatprep.subr.mxu0 0.0
        %1116 = vmatpush2.msra.mxu0 0.0
        %1117 = vmatprep.subr.mxu0 0.0
        %1118 = vmatpush2.msra.mxu0 0.0
        %1119 = vmatprep.subr.mxu0 0.0
        %1120 = vmatpush2.msra.mxu0 0.0
        %1121 = vmatprep.subr.mxu0 0.0
        %1122 = vmatpush2.msra.mxu0 0.0
        %1123 = vmatprep.subr.mxu0 0.0
        %1124 = vmatpush2.msra.mxu0 0.0
        %1125 = vmatprep.mubr.f32.mxu0 0.0
        %1126 = vmatmul.mubr.f32.gmra.mxu0 %v1059
        %v1127 = vpop.f32.mrf.mxu0
        %v1128 = vadd.f32 %v1055, %v1127
        %v1129 = vpop.f32.mrf.mxu0
        %1130 = vdwg.mxu0
        %1131 = vrot.lane.b32.xlu0 %v489, 112
        %v1132 = vpop.permute.xlu0 %1131
        %1133 = vrot.lane.b32.xlu0 %v570, 112
        %v1134 = vpop.permute.xlu0 %1133
        %v1135 = vsel %vm654, %v1132, 0
        %v1137 = vsel %vm654, %v1134, 0
        %1139 = vmatprep.subr.mxu0 0.0
        %1140 = vmatpush1.xpose.msra.mxu0 0.0
        %1141 = vmatprep.subr.mxu0 0.0
        %1142 = vmatpush1.xpose.msra.mxu0 0.0
        %1143 = vmatprep.subr.mxu0 0.0
        %1144 = vmatpush1.xpose.msra.mxu0 0.0
        %1145 = vmatprep.subr.mxu0 0.0
        %1146 = vmatpush1.xpose.msra.mxu0 0.0
        %1147 = vmatprep.subr.mxu0 0.0
        %1148 = vmatpush1.xpose.msra.mxu0 0.0
        %1149 = vmatprep.subr.mxu0 0.0
        %1150 = vmatpush1.xpose.msra.mxu0 0.0
        %1151 = vmatprep.subr.mxu0 0.0
        %1152 = vmatpush1.xpose.msra.mxu0 0.0
        %1153 = vmatprep.subr.mxu0 0.0
        %1154 = vmatpush1.xpose.msra.mxu0 0.0
        %1155 = vmatprep.subr.mxu0 0.0
        %1156 = vmatpush1.xpose.msra.mxu0 0.0
        %1157 = vmatprep.subr.mxu0 0.0
        %1158 = vmatpush1.xpose.msra.mxu0 0.0
        %1159 = vmatprep.subr.mxu0 0.0
        %1160 = vmatpush1.xpose.msra.mxu0 0.0
        %1161 = vmatprep.subr.mxu0 0.0
        %1162 = vmatpush1.xpose.msra.mxu0 0.0
        %1163 = vmatprep.subr.mxu0 0.0
        %1164 = vmatpush1.xpose.msra.mxu0 0.0
        %1165 = vmatprep.subr.mxu0 0.0
        %1166 = vmatpush1.xpose.msra.mxu0 0.0
        %1167 = vmatprep.subr.mxu0 0.0
        %1168 = vmatpush1.xpose.msra.mxu0 0.0
        %1169 = vmatprep.subr.mxu0 0.0
        %1170 = vmatpush1.xpose.msra.mxu0 %v1137
        %1171 = vmatprep.subr.mxu0 0.0
        %1172 = vmatpush2.xpose.msra.mxu0 0.0
        %1173 = vmatprep.subr.mxu0 0.0
        %1174 = vmatpush2.xpose.msra.mxu0 0.0
        %1175 = vmatprep.subr.mxu0 0.0
        %1176 = vmatpush2.xpose.msra.mxu0 0.0
        %1177 = vmatprep.subr.mxu0 0.0
        %1178 = vmatpush2.xpose.msra.mxu0 0.0
        %1179 = vmatprep.subr.mxu0 0.0
        %1180 = vmatpush2.xpose.msra.mxu0 0.0
        %1181 = vmatprep.subr.mxu0 0.0
        %1182 = vmatpush2.xpose.msra.mxu0 0.0
        %1183 = vmatprep.subr.mxu0 0.0
        %1184 = vmatpush2.xpose.msra.mxu0 0.0
        %1185 = vmatprep.subr.mxu0 0.0
        %1186 = vmatpush2.xpose.msra.mxu0 0.0
        %1187 = vmatprep.subr.mxu0 0.0
        %1188 = vmatpush2.xpose.msra.mxu0 0.0
        %1189 = vmatprep.subr.mxu0 0.0
        %1190 = vmatpush2.xpose.msra.mxu0 0.0
        %1191 = vmatprep.subr.mxu0 0.0
        %1192 = vmatpush2.xpose.msra.mxu0 0.0
        %1193 = vmatprep.subr.mxu0 0.0
        %1194 = vmatpush2.xpose.msra.mxu0 0.0
        %1195 = vmatprep.subr.mxu0 0.0
        %1196 = vmatpush2.xpose.msra.mxu0 0.0
        %1197 = vmatprep.subr.mxu0 0.0
        %1198 = vmatpush2.xpose.msra.mxu0 0.0
        %1199 = vmatprep.subr.mxu0 0.0
        %1200 = vmatpush2.xpose.msra.mxu0 0.0
        %1201 = vmatprep.subr.mxu0 0.0
        %1202 = vmatpush2.xpose.msra.mxu0 0.0
        %1203 = vmatprep.mubr.f32.mxu0 0.0
        %1204 = vmatmul.mubr.f32.gmra.mxu0 %v1135
        %v1205 = vpop.f32.mrf.mxu0
        %v1206 = vadd.f32 0.0, %v1205
        %v1207 = vpop.f32.mrf.mxu0
        %1208 = vdwg.mxu0
        %v1209 = vmul.f32 %v1206, 0.35355338
        %v1210 = vsel %vm654, %v1209, -inf
        %1211 = vmax.xlane.f32.xlu0 %v1210
        %v1212 = vpop.xlane.xlu0 %1211
        %v1213 = vsub.f32 %v1209, %v1212
        %v1214 = vmul.f32 %v1213, 1.442695
        %v1215 = vpow.pop %v1214
        %v1216 = vsel %vm654, %v1215, 0.0
        %1217 = vadd.xlane.f32.xlu0 %v1216
        %v1218 = vpop.xlane.xlu0 %1217
        %v1219 = vrcp.pop %v1218
        %v1220 = vmul.f32 %v1215, %v1219
        %1221 = vrot.lane.b32.xlu0 %v651, 112
        %v1222 = vpop.permute.xlu0 %1221
        %v1225 = vsel %vm654, %v1220, 0
        %1227 = vmatprep.subr.mxu0 0.0
        %1228 = vmatpush1.msra.mxu0 0.0
        %1229 = vmatprep.subr.mxu0 0.0
        %1230 = vmatpush1.msra.mxu0 0.0
        %1231 = vmatprep.subr.mxu0 0.0
        %1232 = vmatpush1.msra.mxu0 0.0
        %1233 = vmatprep.subr.mxu0 0.0
        %1234 = vmatpush1.msra.mxu0 0.0
        %1235 = vmatprep.subr.mxu0 0.0
        %1236 = vmatpush1.msra.mxu0 0.0
        %1237 = vmatprep.subr.mxu0 0.0
        %1238 = vmatpush1.msra.mxu0 0.0
        %1239 = vmatprep.subr.mxu0 0.0
        %1240 = vmatpush1.msra.mxu0 0.0
        %1241 = vmatprep.subr.mxu0 0.0
        %1242 = vmatpush1.msra.mxu0 0.0
        %1243 = vmatprep.subr.mxu0 0.0
        %1244 = vmatpush1.msra.mxu0 0.0
        %1245 = vmatprep.subr.mxu0 0.0
        %1246 = vmatpush1.msra.mxu0 0.0
        %1247 = vmatprep.subr.mxu0 0.0
        %1248 = vmatpush1.msra.mxu0 0.0
        %1249 = vmatprep.subr.mxu0 0.0
        %1250 = vmatpush1.msra.mxu0 0.0
        %1251 = vmatprep.subr.mxu0 0.0
        %1252 = vmatpush1.msra.mxu0 0.0
        %1253 = vmatprep.subr.mxu0 0.0
        %1254 = vmatpush1.msra.mxu0 0.0
        %1255 = vmatprep.subr.mxu0 0.0
        %1256 = vmatpush1.msra.mxu0 0.0
        %1257 = vmatprep.subr.mxu0 0.0
        %1258 = vmatpush1.msra.mxu0 %v1222
        %1259 = vmatprep.subr.mxu0 0.0
        %1260 = vmatpush2.msra.mxu0 0.0
        %1261 = vmatprep.subr.mxu0 0.0
        %1262 = vmatpush2.msra.mxu0 0.0
        %1263 = vmatprep.subr.mxu0 0.0
        %1264 = vmatpush2.msra.mxu0 0.0
        %1265 = vmatprep.subr.mxu0 0.0
        %1266 = vmatpush2.msra.mxu0 0.0
        %1267 = vmatprep.subr.mxu0 0.0
        %1268 = vmatpush2.msra.mxu0 0.0
        %1269 = vmatprep.subr.mxu0 0.0
        %1270 = vmatpush2.msra.mxu0 0.0
        %1271 = vmatprep.subr.mxu0 0.0
        %1272 = vmatpush2.msra.mxu0 0.0
        %1273 = vmatprep.subr.mxu0 0.0
        %1274 = vmatpush2.msra.mxu0 0.0
        %1275 = vmatprep.subr.mxu0 0.0
        %1276 = vmatpush2.msra.mxu0 0.0
        %1277 = vmatprep.subr.mxu0 0.0
        %1278 = vmatpush2.msra.mxu0 0.0
        %1279 = vmatprep.subr.mxu0 0.0
        %1280 = vmatpush2.msra.mxu0 0.0
        %1281 = vmatprep.subr.mxu0 0.0
        %1282 = vmatpush2.msra.mxu0 0.0
        %1283 = vmatprep.subr.mxu0 0.0
        %1284 = vmatpush2.msra.mxu0 0.0
        %1285 = vmatprep.subr.mxu0 0.0
        %1286 = vmatpush2.msra.mxu0 0.0
        %1287 = vmatprep.subr.mxu0 0.0
        %1288 = vmatpush2.msra.mxu0 0.0
        %1289 = vmatprep.subr.mxu0 0.0
        %1290 = vmatpush2.msra.mxu0 0.0
        %1291 = vmatprep.mubr.f32.mxu0 0.0
        %1292 = vmatmul.mubr.f32.gmra.mxu0 %v1225
        %v1293 = vpop.f32.mrf.mxu0
        %v1294 = vadd.f32 0.0, %v1293
        %v1295 = vpop.f32.mrf.mxu0
        %1296 = vdwg.mxu0
        %v1297 = vld [vmem:[#allocation10 + $0x10] sm:$0xff]
        %v1299 = vsel %vm654, %v1294, 0
        %1301 = vmatprep.subr.mxu0 0.0
        %1302 = vmatpush1.msra.mxu0 0.0
        %1303 = vmatprep.subr.mxu0 0.0
        %1304 = vmatpush1.msra.mxu0 0.0
        %1305 = vmatprep.subr.mxu0 0.0
        %1306 = vmatpush1.msra.mxu0 0.0
        %1307 = vmatprep.subr.mxu0 0.0
        %1308 = vmatpush1.msra.mxu0 0.0
        %1309 = vmatprep.subr.mxu0 0.0
        %1310 = vmatpush1.msra.mxu0 0.0
        %1311 = vmatprep.subr.mxu0 0.0
        %1312 = vmatpush1.msra.mxu0 0.0
        %1313 = vmatprep.subr.mxu0 0.0
        %1314 = vmatpush1.msra.mxu0 0.0
        %1315 = vmatprep.subr.mxu0 0.0
        %1316 = vmatpush1.msra.mxu0 0.0
        %1317 = vmatprep.subr.mxu0 0.0
        %1318 = vmatpush1.msra.mxu0 0.0
        %1319 = vmatprep.subr.mxu0 0.0
        %1320 = vmatpush1.msra.mxu0 0.0
        %1321 = vmatprep.subr.mxu0 0.0
        %1322 = vmatpush1.msra.mxu0 0.0
        %1323 = vmatprep.subr.mxu0 0.0
        %1324 = vmatpush1.msra.mxu0 0.0
        %1325 = vmatprep.subr.mxu0 0.0
        %1326 = vmatpush1.msra.mxu0 0.0
        %1327 = vmatprep.subr.mxu0 0.0
        %1328 = vmatpush1.msra.mxu0 0.0
        %1329 = vmatprep.subr.mxu0 0.0
        %1330 = vmatpush1.msra.mxu0 0.0
        %1331 = vmatprep.subr.mxu0 0.0
        %1332 = vmatpush1.msra.mxu0 %v1297
        %1333 = vmatprep.subr.mxu0 0.0
        %1334 = vmatpush2.msra.mxu0 0.0
        %1335 = vmatprep.subr.mxu0 0.0
        %1336 = vmatpush2.msra.mxu0 0.0
        %1337 = vmatprep.subr.mxu0 0.0
        %1338 = vmatpush2.msra.mxu0 0.0
        %1339 = vmatprep.subr.mxu0 0.0
        %1340 = vmatpush2.msra.mxu0 0.0
        %1341 = vmatprep.subr.mxu0 0.0
        %1342 = vmatpush2.msra.mxu0 0.0
        %1343 = vmatprep.subr.mxu0 0.0
        %1344 = vmatpush2.msra.mxu0 0.0
        %1345 = vmatprep.subr.mxu0 0.0
        %1346 = vmatpush2.msra.mxu0 0.0
        %1347 = vmatprep.subr.mxu0 0.0
        %1348 = vmatpush2.msra.mxu0 0.0
        %1349 = vmatprep.subr.mxu0 0.0
        %1350 = vmatpush2.msra.mxu0 0.0
        %1351 = vmatprep.subr.mxu0 0.0
        %1352 = vmatpush2.msra.mxu0 0.0
        %1353 = vmatprep.subr.mxu0 0.0
        %1354 = vmatpush2.msra.mxu0 0.0
        %1355 = vmatprep.subr.mxu0 0.0
        %1356 = vmatpush2.msra.mxu0 0.0
        %1357 = vmatprep.subr.mxu0 0.0
        %1358 = vmatpush2.msra.mxu0 0.0
        %1359 = vmatprep.subr.mxu0 0.0
        %1360 = vmatpush2.msra.mxu0 0.0
        %1361 = vmatprep.subr.mxu0 0.0
        %1362 = vmatpush2.msra.mxu0 0.0
        %1363 = vmatprep.subr.mxu0 0.0
        %1364 = vmatpush2.msra.mxu0 0.0
        %1365 = vmatprep.mubr.f32.mxu0 0.0
        %1366 = vmatmul.mubr.f32.gmra.mxu0 %v1299
        %v1367 = vpop.f32.mrf.mxu0
        %v1368 = vadd.f32 0.0, %v1367
        %v1369 = vpop.f32.mrf.mxu0
        %1370 = vdwg.mxu0
        %v1371 = vadd.f32 %v1128, %v1368
        %1372 = vrot.lane.b32.xlu0 %v489, 104
        %v1373 = vpop.permute.xlu0 %1372
        %1374 = vrot.lane.b32.xlu0 %v570, 104
        %v1375 = vpop.permute.xlu0 %1374
        %v1376 = vsel %vm654, %v1373, 0
        %v1378 = vsel %vm654, %v1375, 0
        %1380 = vmatprep.subr.mxu0 0.0
        %1381 = vmatpush1.xpose.msra.mxu0 0.0
        %1382 = vmatprep.subr.mxu0 0.0
        %1383 = vmatpush1.xpose.msra.mxu0 0.0
        %1384 = vmatprep.subr.mxu0 0.0
        %1385 = vmatpush1.xpose.msra.mxu0 0.0
        %1386 = vmatprep.subr.mxu0 0.0
        %1387 = vmatpush1.xpose.msra.mxu0 0.0
        %1388 = vmatprep.subr.mxu0 0.0
        %1389 = vmatpush1.xpose.msra.mxu0 0.0
        %1390 = vmatprep.subr.mxu0 0.0
        %1391 = vmatpush1.xpose.msra.mxu0 0.0
        %1392 = vmatprep.subr.mxu0 0.0
        %1393 = vmatpush1.xpose.msra.mxu0 0.0
        %1394 = vmatprep.subr.mxu0 0.0
        %1395 = vmatpush1.xpose.msra.mxu0 0.0
        %1396 = vmatprep.subr.mxu0 0.0
        %1397 = vmatpush1.xpose.msra.mxu0 0.0
        %1398 = vmatprep.subr.mxu0 0.0
        %1399 = vmatpush1.xpose.msra.mxu0 0.0
        %1400 = vmatprep.subr.mxu0 0.0
        %1401 = vmatpush1.xpose.msra.mxu0 0.0
        %1402 = vmatprep.subr.mxu0 0.0
        %1403 = vmatpush1.xpose.msra.mxu0 0.0
        %1404 = vmatprep.subr.mxu0 0.0
        %1405 = vmatpush1.xpose.msra.mxu0 0.0
        %1406 = vmatprep.subr.mxu0 0.0
        %1407 = vmatpush1.xpose.msra.mxu0 0.0
        %1408 = vmatprep.subr.mxu0 0.0
        %1409 = vmatpush1.xpose.msra.mxu0 0.0
        %1410 = vmatprep.subr.mxu0 0.0
        %1411 = vmatpush1.xpose.msra.mxu0 %v1378
        %1412 = vmatprep.subr.mxu0 0.0
        %1413 = vmatpush2.xpose.msra.mxu0 0.0
        %1414 = vmatprep.subr.mxu0 0.0
        %1415 = vmatpush2.xpose.msra.mxu0 0.0
        %1416 = vmatprep.subr.mxu0 0.0
        %1417 = vmatpush2.xpose.msra.mxu0 0.0
        %1418 = vmatprep.subr.mxu0 0.0
        %1419 = vmatpush2.xpose.msra.mxu0 0.0
        %1420 = vmatprep.subr.mxu0 0.0
        %1421 = vmatpush2.xpose.msra.mxu0 0.0
        %1422 = vmatprep.subr.mxu0 0.0
        %1423 = vmatpush2.xpose.msra.mxu0 0.0
        %1424 = vmatprep.subr.mxu0 0.0
        %1425 = vmatpush2.xpose.msra.mxu0 0.0
        %1426 = vmatprep.subr.mxu0 0.0
        %1427 = vmatpush2.xpose.msra.mxu0 0.0
        %1428 = vmatprep.subr.mxu0 0.0
        %1429 = vmatpush2.xpose.msra.mxu0 0.0
        %1430 = vmatprep.subr.mxu0 0.0
        %1431 = vmatpush2.xpose.msra.mxu0 0.0
        %1432 = vmatprep.subr.mxu0 0.0
        %1433 = vmatpush2.xpose.msra.mxu0 0.0
        %1434 = vmatprep.subr.mxu0 0.0
        %1435 = vmatpush2.xpose.msra.mxu0 0.0
        %1436 = vmatprep.subr.mxu0 0.0
        %1437 = vmatpush2.xpose.msra.mxu0 0.0
        %1438 = vmatprep.subr.mxu0 0.0
        %1439 = vmatpush2.xpose.msra.mxu0 0.0
        %1440 = vmatprep.subr.mxu0 0.0
        %1441 = vmatpush2.xpose.msra.mxu0 0.0
        %1442 = vmatprep.subr.mxu0 0.0
        %1443 = vmatpush2.xpose.msra.mxu0 0.0
        %1444 = vmatprep.mubr.f32.mxu0 0.0
        %1445 = vmatmul.mubr.f32.gmra.mxu0 %v1376
        %v1446 = vpop.f32.mrf.mxu0
        %v1447 = vadd.f32 0.0, %v1446
        %v1448 = vpop.f32.mrf.mxu0
        %1449 = vdwg.mxu0
        %v1450 = vmul.f32 %v1447, 0.35355338
        %v1451 = vsel %vm654, %v1450, -inf
        %1452 = vmax.xlane.f32.xlu0 %v1451
        %v1453 = vpop.xlane.xlu0 %1452
        %v1454 = vsub.f32 %v1450, %v1453
        %v1455 = vmul.f32 %v1454, 1.442695
        %v1456 = vpow.pop %v1455
        %v1457 = vsel %vm654, %v1456, 0.0
        %1458 = vadd.xlane.f32.xlu0 %v1457
        %v1459 = vpop.xlane.xlu0 %1458
        %v1460 = vrcp.pop %v1459
        %v1461 = vmul.f32 %v1456, %v1460
        %1462 = vrot.lane.b32.xlu0 %v651, 104
        %v1463 = vpop.permute.xlu0 %1462
        %v1466 = vsel %vm654, %v1461, 0
        %1468 = vmatprep.subr.mxu0 0.0
        %1469 = vmatpush1.msra.mxu0 0.0
        %1470 = vmatprep.subr.mxu0 0.0
        %1471 = vmatpush1.msra.mxu0 0.0
        %1472 = vmatprep.subr.mxu0 0.0
        %1473 = vmatpush1.msra.mxu0 0.0
        %1474 = vmatprep.subr.mxu0 0.0
        %1475 = vmatpush1.msra.mxu0 0.0
        %1476 = vmatprep.subr.mxu0 0.0
        %1477 = vmatpush1.msra.mxu0 0.0
        %1478 = vmatprep.subr.mxu0 0.0
        %1479 = vmatpush1.msra.mxu0 0.0
        %1480 = vmatprep.subr.mxu0 0.0
        %1481 = vmatpush1.msra.mxu0 0.0
        %1482 = vmatprep.subr.mxu0 0.0
        %1483 = vmatpush1.msra.mxu0 0.0
        %1484 = vmatprep.subr.mxu0 0.0
        %1485 = vmatpush1.msra.mxu0 0.0
        %1486 = vmatprep.subr.mxu0 0.0
        %1487 = vmatpush1.msra.mxu0 0.0
        %1488 = vmatprep.subr.mxu0 0.0
        %1489 = vmatpush1.msra.mxu0 0.0
        %1490 = vmatprep.subr.mxu0 0.0
        %1491 = vmatpush1.msra.mxu0 0.0
        %1492 = vmatprep.subr.mxu0 0.0
        %1493 = vmatpush1.msra.mxu0 0.0
        %1494 = vmatprep.subr.mxu0 0.0
        %1495 = vmatpush1.msra.mxu0 0.0
        %1496 = vmatprep.subr.mxu0 0.0
        %1497 = vmatpush1.msra.mxu0 0.0
        %1498 = vmatprep.subr.mxu0 0.0
        %1499 = vmatpush1.msra.mxu0 %v1463
        %1500 = vmatprep.subr.mxu0 0.0
        %1501 = vmatpush2.msra.mxu0 0.0
        %1502 = vmatprep.subr.mxu0 0.0
        %1503 = vmatpush2.msra.mxu0 0.0
        %1504 = vmatprep.subr.mxu0 0.0
        %1505 = vmatpush2.msra.mxu0 0.0
        %1506 = vmatprep.subr.mxu0 0.0
        %1507 = vmatpush2.msra.mxu0 0.0
        %1508 = vmatprep.subr.mxu0 0.0
        %1509 = vmatpush2.msra.mxu0 0.0
        %1510 = vmatprep.subr.mxu0 0.0
        %1511 = vmatpush2.msra.mxu0 0.0
        %1512 = vmatprep.subr.mxu0 0.0
        %1513 = vmatpush2.msra.mxu0 0.0
        %1514 = vmatprep.subr.mxu0 0.0
        %1515 = vmatpush2.msra.mxu0 0.0
        %1516 = vmatprep.subr.mxu0 0.0
        %1517 = vmatpush2.msra.mxu0 0.0
        %1518 = vmatprep.subr.mxu0 0.0
        %1519 = vmatpush2.msra.mxu0 0.0
        %1520 = vmatprep.subr.mxu0 0.0
        %1521 = vmatpush2.msra.mxu0 0.0
        %1522 = vmatprep.subr.mxu0 0.0
        %1523 = vmatpush2.msra.mxu0 0.0
        %1524 = vmatprep.subr.mxu0 0.0
        %1525 = vmatpush2.msra.mxu0 0.0
        %1526 = vmatprep.subr.mxu0 0.0
        %1527 = vmatpush2.msra.mxu0 0.0
        %1528 = vmatprep.subr.mxu0 0.0
        %1529 = vmatpush2.msra.mxu0 0.0
        %1530 = vmatprep.subr.mxu0 0.0
        %1531 = vmatpush2.msra.mxu0 0.0
        %1532 = vmatprep.mubr.f32.mxu0 0.0
        %1533 = vmatmul.mubr.f32.gmra.mxu0 %v1466
        %v1534 = vpop.f32.mrf.mxu0
        %v1535 = vadd.f32 0.0, %v1534
        %v1536 = vpop.f32.mrf.mxu0
        %1537 = vdwg.mxu0
        %v1538 = vld [vmem:[#allocation10 + $0x18] sm:$0xff]
        %v1540 = vsel %vm654, %v1535, 0
        %1542 = vmatprep.subr.mxu0 0.0
        %1543 = vmatpush1.msra.mxu0 0.0
        %1544 = vmatprep.subr.mxu0 0.0
        %1545 = vmatpush1.msra.mxu0 0.0
        %1546 = vmatprep.subr.mxu0 0.0
        %1547 = vmatpush1.msra.mxu0 0.0
        %1548 = vmatprep.subr.mxu0 0.0
        %1549 = vmatpush1.msra.mxu0 0.0
        %1550 = vmatprep.subr.mxu0 0.0
        %1551 = vmatpush1.msra.mxu0 0.0
        %1552 = vmatprep.subr.mxu0 0.0
        %1553 = vmatpush1.msra.mxu0 0.0
        %1554 = vmatprep.subr.mxu0 0.0
        %1555 = vmatpush1.msra.mxu0 0.0
        %1556 = vmatprep.subr.mxu0 0.0
        %1557 = vmatpush1.msra.mxu0 0.0
        %1558 = vmatprep.subr.mxu0 0.0
        %1559 = vmatpush1.msra.mxu0 0.0
        %1560 = vmatprep.subr.mxu0 0.0
        %1561 = vmatpush1.msra.mxu0 0.0
        %1562 = vmatprep.subr.mxu0 0.0
        %1563 = vmatpush1.msra.mxu0 0.0
        %1564 = vmatprep.subr.mxu0 0.0
        %1565 = vmatpush1.msra.mxu0 0.0
        %1566 = vmatprep.subr.mxu0 0.0
        %1567 = vmatpush1.msra.mxu0 0.0
        %1568 = vmatprep.subr.mxu0 0.0
        %1569 = vmatpush1.msra.mxu0 0.0
        %1570 = vmatprep.subr.mxu0 0.0
        %1571 = vmatpush1.msra.mxu0 0.0
        %1572 = vmatprep.subr.mxu0 0.0
        %1573 = vmatpush1.msra.mxu0 %v1538
        %1574 = vmatprep.subr.mxu0 0.0
        %1575 = vmatpush2.msra.mxu0 0.0
        %1576 = vmatprep.subr.mxu0 0.0
        %1577 = vmatpush2.msra.mxu0 0.0
        %1578 = vmatprep.subr.mxu0 0.0
        %1579 = vmatpush2.msra.mxu0 0.0
        %1580 = vmatprep.subr.mxu0 0.0
        %1581 = vmatpush2.msra.mxu0 0.0
        %1582 = vmatprep.subr.mxu0 0.0
        %1583 = vmatpush2.msra.mxu0 0.0
        %1584 = vmatprep.subr.mxu0 0.0
        %1585 = vmatpush2.msra.mxu0 0.0
        %1586 = vmatprep.subr.mxu0 0.0
        %1587 = vmatpush2.msra.mxu0 0.0
        %1588 = vmatprep.subr.mxu0 0.0
        %1589 = vmatpush2.msra.mxu0 0.0
        %1590 = vmatprep.subr.mxu0 0.0
        %1591 = vmatpush2.msra.mxu0 0.0
        %1592 = vmatprep.subr.mxu0 0.0
        %1593 = vmatpush2.msra.mxu0 0.0
        %1594 = vmatprep.subr.mxu0 0.0
        %1595 = vmatpush2.msra.mxu0 0.0
        %1596 = vmatprep.subr.mxu0 0.0
        %1597 = vmatpush2.msra.mxu0 0.0
        %1598 = vmatprep.subr.mxu0 0.0
        %1599 = vmatpush2.msra.mxu0 0.0
        %1600 = vmatprep.subr.mxu0 0.0
        %1601 = vmatpush2.msra.mxu0 0.0
        %1602 = vmatprep.subr.mxu0 0.0
        %1603 = vmatpush2.msra.mxu0 0.0
        %1604 = vmatprep.subr.mxu0 0.0
        %1605 = vmatpush2.msra.mxu0 0.0
        %1606 = vmatprep.mubr.f32.mxu0 0.0
        %1607 = vmatmul.mubr.f32.gmra.mxu0 %v1540
        %v1608 = vpop.f32.mrf.mxu0
        %v1609 = vadd.f32 0.0, %v1608
        %v1610 = vpop.f32.mrf.mxu0
        %1611 = vdwg.mxu0
        %v1612 = vadd.f32 %v1371, %v1609
        %v1613 = vld [vmem:[%s8] sm:$0x1]
        %v1615 = vlaneseq
        %v1616 = vshrl.u32 %v1615, 7
        %v1617 = vsub.s32 0, %v1616
        %v1618 = vrot.slane %v1613, %v1617
        %v1620 = vadd.f32 %v1612, %v1618
        %v1621 = vadd.f32 %v406, %v1620
        %1622 = vst.msk [vmem:[%s405] sm:$0xff] %vm418, %v1621
        %s1623 = sand.u32 %s230, 1
        %s1624 = scalar_lea.sflag [#allocation4], %s1623
        %s1625 = sand.u32 %s230, 1
        %s1626 = smul.addr %s1625, 8
        %s1627 = scalar_lea.vmem [#allocation11], %s1626
        // Predicated region
        $region77: #{tpu_custom_call.1} parent=55 // pred_check
          %p1628 = pneg %p240
        $region78: #{tpu_custom_call.1} parent=55 // pred_check_branch
          %1630 = sbr.rel (%p1628) target = $region80
        $region79: #{tpu_custom_call.1} parent=55 // pred_region
          %s1632 = ssub.s32 128, 128
          %1633 = vsyncadd %s1624, %s1632
          %s1634 = smul.addr %s28, 128
          %s1635 = scalar_lea.hbm %s9, %s1634
          %s1637 = sshll.u32 %s1627, 4
          %s1638 = int_to_ptr.vmem [resolvable:$true] %s1637
          %1640 = dma.vmem_to_hbm [thread:$0]  %s1638, 128, %s1635, %s1624
        $region80: #{tpu_custom_call.1} parent=55 // pred_fallthru
          _
      $region56: #{tpu_custom_call.1} parent=5 // pred_fallthru
        _
      %p1641 = scmp.le.s32.totalorder 2, %s23
      // Predicated region
      $region81: #{tpu_custom_call.1} parent=5 // pred_check
        %p1642 = pneg %p1641
      $region82: #{tpu_custom_call.1} parent=5 // pred_check_branch
        %1644 = sbr.rel (%p1642) target = $region84
      $region83: #{tpu_custom_call.1} parent=5 // pred_region
        %s1645 = ssub.s32 %s23, 2
        // Predicated region
        $region85: #{tpu_custom_call.1} parent=83 // pred_check
          %p1646 = pneg %p246
        $region86: #{tpu_custom_call.1} parent=83 // pred_check_branch
          %1648 = sbr.rel (%p1646) target = $region88
        $region87: #{tpu_custom_call.1} parent=83 // pred_region
          %s1649 = sand.u32 %s231, 1
          %s1650 = scalar_lea.sflag [#allocation4], %s1649
          %s1651 = sand.u32 %s231, 1
          %s1652 = smul.addr %s1651, 8
          %s1653 = scalar_lea.vmem [#allocation11], %s1652
          %1654 = dma.done %s1650, 128
        $region88: #{tpu_custom_call.1} parent=83 // pred_fallthru
          _
      $region84: #{tpu_custom_call.1} parent=5 // pred_fallthru
        _
    $region6: #{tpu_custom_call.1} parent=1 // loop_footer
      %s27 = sadd.s32 1, %s23
    $region7: #{tpu_custom_call.1} parent=1 // loop_footer_branch
      %22 = sbr.rel target = $region3
    $region8: #{tpu_custom_call.1} parent=1 // loop_exit
      _
    %1655 = vsyncpa [#allocation3], 1
    %s1656 = scalar_lea.sflag [#allocation3], 1
    %1657 = vsyncpa %s1656, 1
    %1658 = vsyncpa [#allocation6], 1
    %1659 = vsyncpa [#allocation9], 1
    %1660 = vsyncpa [#allocation4], 1
    %s1661 = scalar_lea.sflag [#allocation4], 1
    %1662 = vsyncpa %s1661, 1

</llo_original>
